<compile_context>
chip_gen: v5e
topology: v5e:2x2
jax: 0.10.0
libtpu: 0.0.40
codegen_flags: <defaults>
</compile_context>

<pallas_src>
from functools import partial

import jax
import jax.numpy as jnp
from jax.experimental import pallas as pl
from jax.experimental.pallas import tpu as pltpu


def _embedding_kernel(tok_ref, seg_ref, pos_ref, tab_ref, gamma_ref, beta_ref,
                      out_ref, *, eps):
    """Fused (tok + seg + pos) embedding gather-sum + LayerNorm, one shot.

    tok_ref / seg_ref / pos_ref: (B*S, 1) int32 column indices into the fused
      table (segment / position region offsets already added in the wrapper).
    tab_ref: (V + n_seg + 512, D) f32 fused embedding table.
    gamma_ref / beta_ref: (1, D) f32 LayerNorm affine parameters.
    out_ref: (B*S, D) f32.
    """
    BS = tok_ref.shape[0]
    Vt = tab_ref.shape[0]

    # "Three-hot" selector: row r has a 1 at its token column, its (offset)
    # segment column and its (offset) position column.  A single MXU matmul
    # then yields tok_emb + seg_emb + pos_emb for every (batch, position).
    col = jax.lax.broadcasted_iota(jnp.int32, (BS, Vt), dimension=1)
    hot = ((col == tok_ref[...]) | (col == seg_ref[...]) | (col == pos_ref[...]))
    hot = hot.astype(jnp.float32)

    # precision=HIGHEST -> the one-hot gather is exact in f32 (default MXU
    # precision would round the table rows to bf16).
    emb = jnp.dot(hot, tab_ref[...],
                  precision=jax.lax.Precision.HIGHEST,
                  preferred_element_type=jnp.float32)            # (BS, D)

    # LayerNorm over the feature axis (matches the PyTorch LayerNorm module).
    mean = jnp.mean(emb, axis=-1, keepdims=True)
    cent = emb - mean
    var = jnp.mean(cent * cent, axis=-1, keepdims=True)
    normed = cent * jax.lax.rsqrt(var + eps)                     # rsqrt -> EUP

    # dropout(p) in eval mode == identity; single full-tile store.
    out_ref[...] = gamma_ref[...] * normed + beta_ref[...]


def make_fused_table(tok_table, seg_table, pos_table):
    """Param-init-time fusion of the three embedding tables (built ONCE)."""
    return jnp.concatenate([tok_table, seg_table, pos_table],
                           axis=0).astype(jnp.float32)


def embedding_forward(tok_ids, seg_ids, fused_table, gamma, beta, *,
                      vocab_size, n_segments, eps=1e-12):
    """tok_ids/seg_ids: (B, S) int. Returns (B, S, D) f32 (eval-mode dropout)."""
    B, S = tok_ids.shape
    Vt, D = fused_table.shape
    BS = B * S

    # Wrapper-side (free) plumbing: flatten the batch into the matmul M dim
    # and pre-add the fused-table region offsets to the ids.
    tok = tok_ids.astype(jnp.int32).reshape(BS, 1)
    seg = (seg_ids.astype(jnp.int32) + vocab_size).reshape(BS, 1)
    pos = jnp.broadcast_to(
        jnp.arange(S, dtype=jnp.int32)[None, :] + (vocab_size + n_segments),
        (B, S)).reshape(BS, 1)
    gamma2 = gamma.astype(jnp.float32).reshape(1, D)
    beta2 = beta.astype(jnp.float32).reshape(1, D)

    vmem = pl.BlockSpec(memory_space=pltpu.MemorySpace.VMEM)
    out = pl.pallas_call(
        partial(_embedding_kernel, eps=eps),
        out_shape=jax.ShapeDtypeStruct((BS, D), jnp.float32),
        in_specs=[vmem] * 6,
        out_specs=vmem,
    )(tok, seg, pos, fused_table, gamma2, beta2)
    return out.reshape(B, S, D)


def _reference(tok_ids, seg_ids, tok_table, pos_table, seg_table, gamma, beta,
               eps=1e-12):
    # Pure-JAX mirror of the PyTorch Embedding.forward (eval mode).
    B, S = tok_ids.shape
    pos = jnp.arange(S)
    emb = tok_table[tok_ids] + pos_table[pos][None, :, :] + seg_table[seg_ids]
    mean = emb.mean(-1, keepdims=True)
    var = ((emb - mean) ** 2).mean(-1, keepdims=True)
    x = (emb - mean) / jnp.sqrt(var + eps)
    return gamma * x + beta


if __name__ == "__main__":
    # config.dim = 32, seq = 8, batch = 2, vocab_size = 64, n_segments = 2
    B, S, D = 2, 8, 32
    VOCAB, N_SEG, MAX_POS = 64, 2, 512

    key = jax.random.PRNGKey(0)
    k_tok, k_pos, k_seg, k_x, k_s, k_g, k_b = jax.random.split(key, 7)

    tok_table = jax.random.normal(k_tok, (VOCAB, D), dtype=jnp.float32)
    pos_table = jax.random.normal(k_pos, (MAX_POS, D), dtype=jnp.float32)
    seg_table = jax.random.normal(k_seg, (N_SEG, D), dtype=jnp.float32)

    # LayerNorm params (init is ones/zeros; perturb slightly to exercise affine).
    gamma = jnp.ones((D,), jnp.float32) + 0.05 * jax.random.normal(k_g, (D,), jnp.float32)
    beta = 0.05 * jax.random.normal(k_b, (D,), jnp.float32)

    x_ids = jax.random.randint(k_x, (B, S), 0, VOCAB, dtype=jnp.int32)
    seg_ids = jax.random.randint(k_s, (B, S), 0, N_SEG, dtype=jnp.int32)

    # Fused table is built ONCE at "param init" time (not per forward call).
    fused_table = make_fused_table(tok_table, seg_table, pos_table)

    out = embedding_forward(x_ids, seg_ids, fused_table, gamma, beta,
                            vocab_size=VOCAB, n_segments=N_SEG)
    out = jax.block_until_ready(out)

    ref = _reference(x_ids, seg_ids, tok_table, pos_table, seg_table, gamma, beta)
    assert out.shape == (B, S, D)
    assert jnp.allclose(out, ref, atol=1e-4, rtol=1e-4), "mismatch vs JAX reference"

    print("KERNEL_OK")
</pallas_src>

<mosaic_0001>
module attributes {stable_mosaic.version = 11 : i64} {
  func.func @_embedding_kernel(%arg0: memref<16x1xi32, #tpu.memory_space<vmem>>, %arg1: memref<16x1xi32, #tpu.memory_space<vmem>>, %arg2: memref<16x1xi32, #tpu.memory_space<vmem>>, %arg3: memref<578x32xf32, #tpu.memory_space<vmem>>, %arg4: memref<1x32xf32, #tpu.memory_space<vmem>>, %arg5: memref<1x32xf32, #tpu.memory_space<vmem>>, %arg6: memref<16x32xf32, #tpu.memory_space<vmem>>) attributes {dimension_semantics = [], scalar_prefetch = 0 : i64, scratch_operands = 0 : i64, tpu.core_type = #tpu.core_type<tc>} {
    %0 = tpu.iota {dimensions = array<i32: 1>} : vector<16x578xi32>
    %c0 = arith.constant 0 : index
    %c0_0 = arith.constant 0 : index
    %1 = vector.load %arg0[%c0, %c0_0] : memref<16x1xi32, #tpu.memory_space<vmem>>, vector<16x1xi32>
    %2 = vector.broadcast %1 : vector<16x1xi32> to vector<16x578xi32>
    %3 = arith.cmpi eq, %0, %2 : vector<16x578xi32>
    %c0_1 = arith.constant 0 : index
    %c0_2 = arith.constant 0 : index
    %4 = vector.load %arg1[%c0_1, %c0_2] : memref<16x1xi32, #tpu.memory_space<vmem>>, vector<16x1xi32>
    %5 = vector.broadcast %4 : vector<16x1xi32> to vector<16x578xi32>
    %6 = arith.cmpi eq, %0, %5 : vector<16x578xi32>
    %7 = arith.ori %3, %6 : vector<16x578xi1>
    %c0_3 = arith.constant 0 : index
    %c0_4 = arith.constant 0 : index
    %8 = vector.load %arg2[%c0_3, %c0_4] : memref<16x1xi32, #tpu.memory_space<vmem>>, vector<16x1xi32>
    %9 = vector.broadcast %8 : vector<16x1xi32> to vector<16x578xi32>
    %10 = arith.cmpi eq, %0, %9 : vector<16x578xi32>
    %11 = arith.ori %7, %10 : vector<16x578xi1>
    %12 = arith.extui %11 : vector<16x578xi1> to vector<16x578xi32>
    %13 = arith.sitofp %12 : vector<16x578xi32> to vector<16x578xf32>
    %c0_5 = arith.constant 0 : index
    %c0_6 = arith.constant 0 : index
    %14 = vector.load %arg3[%c0_5, %c0_6] : memref<578x32xf32, #tpu.memory_space<vmem>>, vector<578x32xf32>
    %cst = arith.constant dense<0.000000e+00> : vector<16x32xf32>
    %15 = tpu.matmul %13, %14, %cst {dimension_numbers = #tpu.dot_dimension_numbers<[1], [0], [0], [1], [0, 0, 1, 1], [], []>, precision = #tpu.contract_precision<fp32>} : vector<16x578xf32>, vector<578x32xf32>, vector<16x32xf32> -> vector<16x32xf32>
    %cst_7 = arith.constant dense<0.000000e+00> : vector<16xf32>
    %16 = vector.multi_reduction <add>, %15, %cst_7 [1] : vector<16x32xf32> to vector<16xf32>
    %17 = vector.shape_cast %16 : vector<16xf32> to vector<16x1xf32>
    %cst_8 = arith.constant 3.200000e+01 : f32
    %18 = vector.broadcast %cst_8 : f32 to vector<16x1xf32>
    %19 = arith.divf %17, %18 : vector<16x1xf32>
    %20 = vector.broadcast %19 : vector<16x1xf32> to vector<16x32xf32>
    %21 = arith.subf %15, %20 : vector<16x32xf32>
    %22 = arith.mulf %21, %21 : vector<16x32xf32>
    %cst_9 = arith.constant dense<0.000000e+00> : vector<16xf32>
    %23 = vector.multi_reduction <add>, %22, %cst_9 [1] : vector<16x32xf32> to vector<16xf32>
    %24 = vector.shape_cast %23 : vector<16xf32> to vector<16x1xf32>
    %cst_10 = arith.constant 3.200000e+01 : f32
    %25 = vector.broadcast %cst_10 : f32 to vector<16x1xf32>
    %26 = arith.divf %24, %25 : vector<16x1xf32>
    %cst_11 = arith.constant 9.99999996E-13 : f32
    %27 = vector.broadcast %cst_11 : f32 to vector<16x1xf32>
    %28 = arith.addf %26, %27 : vector<16x1xf32>
    %29 = math.rsqrt %28 : vector<16x1xf32>
    %30 = vector.broadcast %29 : vector<16x1xf32> to vector<16x32xf32>
    %31 = arith.mulf %21, %30 : vector<16x32xf32>
    %c0_12 = arith.constant 0 : index
    %c0_13 = arith.constant 0 : index
    %32 = vector.load %arg4[%c0_12, %c0_13] : memref<1x32xf32, #tpu.memory_space<vmem>>, vector<1x32xf32>
    %33 = vector.broadcast %32 : vector<1x32xf32> to vector<16x32xf32>
    %34 = arith.mulf %33, %31 : vector<16x32xf32>
    %c0_14 = arith.constant 0 : index
    %c0_15 = arith.constant 0 : index
    %35 = vector.load %arg5[%c0_14, %c0_15] : memref<1x32xf32, #tpu.memory_space<vmem>>, vector<1x32xf32>
    %36 = vector.broadcast %35 : vector<1x32xf32> to vector<16x32xf32>
    %37 = arith.addf %34, %36 : vector<16x32xf32>
    %c0_16 = arith.constant 0 : index
    %c0_17 = arith.constant 0 : index
    %38 = vector.load %arg6[%c0_16, %c0_17] : memref<16x32xf32, #tpu.memory_space<vmem>>, vector<16x32xf32>
    tpu.vector_store %arg6[%c0_16, %c0_17], %37 {strides = array<i32>} : memref<16x32xf32, #tpu.memory_space<vmem>>, vector<16x32xf32>,
    return
  }
}

</mosaic_0001>

<llo_original>
// kernel: tpu_custom_call.1
$region0: #{tpu_custom_call.1}
  #allocation0 [shape = 'u32[]', space=smem, size = 0x4, offset = 0x4, fixed_abs, tag = 'smem constant byte address 0x4 - core index']
  #allocation1 [shape = 'u32[72,128]{1,0:T(1,128)}', space=vmem, size = 0x9000, scoped, tag = 'internal scratch']
  %s0 = inlined_call_operand.vmem [shape: s32[16,1], index: 0, kind: input, shape index: {}]
  %s1 = inlined_call_operand.vmem [shape: s32[16,1], index: 1, kind: input, shape index: {}]
  %s2 = inlined_call_operand.vmem [shape: s32[16,1], index: 2, kind: input, shape index: {}]
  %s3 = inlined_call_operand.vmem [shape: f32[578,32], index: 3, kind: input, shape index: {}]
  %s4 = inlined_call_operand.vmem [shape: f32[1,32], index: 4, kind: input, shape index: {}]
  %s5 = inlined_call_operand.vmem [shape: f32[1,32], index: 5, kind: input, shape index: {}]
  %s6 = inlined_call_operand.hbm [shape: f32[16,32], index: 6, kind: output, shape index: {}]
  %s7 = sld [smem:[#allocation0]]
  $region34: #{tpu_custom_call.1} parent=0
    _
  %s9 = ssub.s32 1, %s7
  %s10 = scalar_select 0, %s9, %s7
  $region1: #{tpu_custom_call.1} parent=0
    #allocation2 [shape = 'u8[8192]{0}', space=vmem, size = 0x2000, scoped, tag = 'output window, operand 0, single buffered']
    #allocation3 [shape = 's32[1]{0}', space=sflag, size = 0x4, scoped, tag = 'scoped memory for tpu_custom_call.1']
    %11 = vsyncpa [#allocation3], 0
    // Predicated region
    $region2: #{tpu_custom_call.1} parent=1 // pred_check
      _
    $region3: #{tpu_custom_call.1} parent=1 // pred_check_branch
      %13 = sbr.rel (0) target = $region5
    $region4: #{tpu_custom_call.1} parent=1 // pred_region
      _
    $region5: #{tpu_custom_call.1} parent=1 // pred_fallthru
      _
    // Predicated region
    $region6: #{tpu_custom_call.1} parent=1 // pred_check
      _
    $region7: #{tpu_custom_call.1} parent=1 // pred_check_branch
      %15 = sbr.rel (0) target = $region9
    $region8: #{tpu_custom_call.1} parent=1 // pred_region
      _
    $region9: #{tpu_custom_call.1} parent=1 // pred_fallthru
      _
    // Predicated region
    $region10: #{tpu_custom_call.1} parent=1 // pred_check
      _
    $region11: #{tpu_custom_call.1} parent=1 // pred_check_branch
      %17 = sbr.rel (0) target = $region13
    $region12: #{tpu_custom_call.1} parent=1 // pred_region
      _
    $region13: #{tpu_custom_call.1} parent=1 // pred_fallthru
      _
    // Predicated region
    $region14: #{tpu_custom_call.1} parent=1 // pred_check
      _
    $region15: #{tpu_custom_call.1} parent=1 // pred_check_branch
      %19 = sbr.rel (0) target = $region17
    $region16: #{tpu_custom_call.1} parent=1 // pred_region
      _
    $region17: #{tpu_custom_call.1} parent=1 // pred_fallthru
      _
    // Predicated region
    $region18: #{tpu_custom_call.1} parent=1 // pred_check
      _
    $region19: #{tpu_custom_call.1} parent=1 // pred_check_branch
      %21 = sbr.rel (0) target = $region21
    $region20: #{tpu_custom_call.1} parent=1 // pred_region
      _
    $region21: #{tpu_custom_call.1} parent=1 // pred_fallthru
      _
    // Predicated region
    $region22: #{tpu_custom_call.1} parent=1 // pred_check
      _
    $region23: #{tpu_custom_call.1} parent=1 // pred_check_branch
      %23 = sbr.rel (0) target = $region25
    $region24: #{tpu_custom_call.1} parent=1 // pred_region
      _
    $region25: #{tpu_custom_call.1} parent=1 // pred_fallthru
      _
    %v24 = vlaneseq
    %v25 = vand.u32 %v24, 127
    %v26 = vadd.s32 %v25, 128
    %v27 = vadd.s32 %v25, 256
    %v28 = vadd.s32 %v25, 384
    %v29 = vadd.s32 %v25, 512
    %v30 = vld [vmem:[%s0] sm:$0xff]
    %v31 = vld [vmem:[%s0 + $0x8] sm:$0xff]
    %32 = vset.pattern.permute.xlu0 0
    %33 = vperm.xlu0 %32, %v30
    %v34 = vpop.permute.xlu0 %33
    %35 = vset.pattern.permute.xlu0 0
    %36 = vperm.xlu0 %35, %v31
    %v37 = vpop.permute.xlu0 %36
    %vm38 = vcmp.eq.s32.totalorder %v25, %v34
    %vm39 = vcmp.eq.s32.totalorder %v26, %v34
    %vm40 = vcmp.eq.s32.totalorder %v27, %v34
    %vm41 = vcmp.eq.s32.totalorder %v28, %v34
    %vm42 = vcmp.eq.s32.totalorder %v29, %v34
    %vm43 = vcmp.eq.s32.totalorder %v25, %v37
    %vm44 = vcmp.eq.s32.totalorder %v26, %v37
    %vm45 = vcmp.eq.s32.totalorder %v27, %v37
    %vm46 = vcmp.eq.s32.totalorder %v28, %v37
    %vm47 = vcmp.eq.s32.totalorder %v29, %v37
    %v48 = vld [vmem:[%s1] sm:$0xff]
    %v49 = vld [vmem:[%s1 + $0x8] sm:$0xff]
    %50 = vset.pattern.permute.xlu0 0
    %51 = vperm.xlu0 %50, %v48
    %v52 = vpop.permute.xlu0 %51
    %53 = vset.pattern.permute.xlu0 0
    %54 = vperm.xlu0 %53, %v49
    %v55 = vpop.permute.xlu0 %54
    %vm56 = vcmp.eq.s32.totalorder %v25, %v52
    %vm57 = vcmp.eq.s32.totalorder %v26, %v52
    %vm58 = vcmp.eq.s32.totalorder %v27, %v52
    %vm59 = vcmp.eq.s32.totalorder %v28, %v52
    %vm60 = vcmp.eq.s32.totalorder %v29, %v52
    %vm61 = vcmp.eq.s32.totalorder %v25, %v55
    %vm62 = vcmp.eq.s32.totalorder %v26, %v55
    %vm63 = vcmp.eq.s32.totalorder %v27, %v55
    %vm64 = vcmp.eq.s32.totalorder %v28, %v55
    %vm65 = vcmp.eq.s32.totalorder %v29, %v55
    %vm66 = vmor %vm38, %vm56
    %vm67 = vmor %vm39, %vm57
    %vm68 = vmor %vm40, %vm58
    %vm69 = vmor %vm41, %vm59
    %vm70 = vmor %vm42, %vm60
    %vm71 = vmor %vm43, %vm61
    %vm72 = vmor %vm44, %vm62
    %vm73 = vmor %vm45, %vm63
    %vm74 = vmor %vm46, %vm64
    %vm75 = vmor %vm47, %vm65
    %v76 = vld [vmem:[%s2] sm:$0xff]
    %v77 = vld [vmem:[%s2 + $0x8] sm:$0xff]
    %78 = vset.pattern.permute.xlu0 0
    %79 = vperm.xlu0 %78, %v76
    %v80 = vpop.permute.xlu0 %79
    %81 = vset.pattern.permute.xlu0 0
    %82 = vperm.xlu0 %81, %v77
    %v83 = vpop.permute.xlu0 %82
    %vm84 = vcmp.eq.s32.totalorder %v25, %v80
    %vm85 = vcmp.eq.s32.totalorder %v26, %v80
    %vm86 = vcmp.eq.s32.totalorder %v27, %v80
    %vm87 = vcmp.eq.s32.totalorder %v28, %v80
    %vm88 = vcmp.eq.s32.totalorder %v29, %v80
    %vm89 = vcmp.eq.s32.totalorder %v25, %v83
    %vm90 = vcmp.eq.s32.totalorder %v26, %v83
    %vm91 = vcmp.eq.s32.totalorder %v27, %v83
    %vm92 = vcmp.eq.s32.totalorder %v28, %v83
    %vm93 = vcmp.eq.s32.totalorder %v29, %v83
    %vm94 = vmor %vm66, %vm84
    %vm95 = vmor %vm67, %vm85
    %vm96 = vmor %vm68, %vm86
    %vm97 = vmor %vm69, %vm87
    %vm98 = vmor %vm70, %vm88
    %vm99 = vmor %vm71, %vm89
    %vm100 = vmor %vm72, %vm90
    %vm101 = vmor %vm73, %vm91
    %vm102 = vmor %vm74, %vm92
    %vm103 = vmor %vm75, %vm93
    %v104 = vsel %vm94, 1, 0
    %v105 = vsel %vm95, 1, 0
    %v106 = vsel %vm96, 1, 0
    %v107 = vsel %vm97, 1, 0
    %v108 = vsel %vm98, 1, 0
    %v109 = vsel %vm99, 1, 0
    %v110 = vsel %vm100, 1, 0
    %v111 = vsel %vm101, 1, 0
    %v112 = vsel %vm102, 1, 0
    %v113 = vsel %vm103, 1, 0
    %v114 = vcvt.s32.f32 %v104
    %v115 = vcvt.s32.f32 %v105
    %v116 = vcvt.s32.f32 %v106
    %v117 = vcvt.s32.f32 %v107
    %v118 = vcvt.s32.f32 %v108
    %v119 = vcvt.s32.f32 %v109
    %v120 = vcvt.s32.f32 %v110
    %v121 = vcvt.s32.f32 %v111
    %v122 = vcvt.s32.f32 %v112
    %v123 = vcvt.s32.f32 %v113
    %v124 = vld [vmem:[%s3] sm:$0xff]
    %v125 = vld [vmem:[%s3 + $0x8] sm:$0xff]
    %v126 = vld [vmem:[%s3 + $0x10] sm:$0xff]
    %v127 = vld [vmem:[%s3 + $0x18] sm:$0xff]
    %v128 = vld [vmem:[%s3 + $0x20] sm:$0xff]
    %v129 = vld [vmem:[%s3 + $0x28] sm:$0xff]
    %v130 = vld [vmem:[%s3 + $0x30] sm:$0xff]
    %v131 = vld [vmem:[%s3 + $0x38] sm:$0xff]
    %v132 = vld [vmem:[%s3 + $0x40] sm:$0xff]
    %v133 = vld [vmem:[%s3 + $0x48] sm:$0xff]
    %v134 = vld [vmem:[%s3 + $0x50] sm:$0xff]
    %v135 = vld [vmem:[%s3 + $0x58] sm:$0xff]
    %v136 = vld [vmem:[%s3 + $0x60] sm:$0xff]
    %v137 = vld [vmem:[%s3 + $0x68] sm:$0xff]
    %v138 = vld [vmem:[%s3 + $0x70] sm:$0xff]
    %v139 = vld [vmem:[%s3 + $0x78] sm:$0xff]
    %v140 = vld [vmem:[%s3 + $0x80] sm:$0xff]
    %v141 = vld [vmem:[%s3 + $0x88] sm:$0xff]
    %v142 = vld [vmem:[%s3 + $0x90] sm:$0xff]
    %v143 = vld [vmem:[%s3 + $0x98] sm:$0xff]
    %v144 = vld [vmem:[%s3 + $0xa0] sm:$0xff]
    %v145 = vld [vmem:[%s3 + $0xa8] sm:$0xff]
    %v146 = vld [vmem:[%s3 + $0xb0] sm:$0xff]
    %v147 = vld [vmem:[%s3 + $0xb8] sm:$0xff]
    %v148 = vld [vmem:[%s3 + $0xc0] sm:$0xff]
    %v149 = vld [vmem:[%s3 + $0xc8] sm:$0xff]
    %v150 = vld [vmem:[%s3 + $0xd0] sm:$0xff]
    %v151 = vld [vmem:[%s3 + $0xd8] sm:$0xff]
    %v152 = vld [vmem:[%s3 + $0xe0] sm:$0xff]
    %v153 = vld [vmem:[%s3 + $0xe8] sm:$0xff]
    %v154 = vld [vmem:[%s3 + $0xf0] sm:$0xff]
    %v155 = vld [vmem:[%s3 + $0xf8] sm:$0xff]
    %v156 = vld [vmem:[%s3 + $0x100] sm:$0xff]
    %v157 = vld [vmem:[%s3 + $0x108] sm:$0xff]
    %v158 = vld [vmem:[%s3 + $0x110] sm:$0xff]
    %v159 = vld [vmem:[%s3 + $0x118] sm:$0xff]
    %v160 = vld [vmem:[%s3 + $0x120] sm:$0xff]
    %v161 = vld [vmem:[%s3 + $0x128] sm:$0xff]
    %v162 = vld [vmem:[%s3 + $0x130] sm:$0xff]
    %v163 = vld [vmem:[%s3 + $0x138] sm:$0xff]
    %v164 = vld [vmem:[%s3 + $0x140] sm:$0xff]
    %v165 = vld [vmem:[%s3 + $0x148] sm:$0xff]
    %v166 = vld [vmem:[%s3 + $0x150] sm:$0xff]
    %v167 = vld [vmem:[%s3 + $0x158] sm:$0xff]
    %v168 = vld [vmem:[%s3 + $0x160] sm:$0xff]
    %v169 = vld [vmem:[%s3 + $0x168] sm:$0xff]
    %v170 = vld [vmem:[%s3 + $0x170] sm:$0xff]
    %v171 = vld [vmem:[%s3 + $0x178] sm:$0xff]
    %v172 = vld [vmem:[%s3 + $0x180] sm:$0xff]
    %v173 = vld [vmem:[%s3 + $0x188] sm:$0xff]
    %v174 = vld [vmem:[%s3 + $0x190] sm:$0xff]
    %v175 = vld [vmem:[%s3 + $0x198] sm:$0xff]
    %v176 = vld [vmem:[%s3 + $0x1a0] sm:$0xff]
    %v177 = vld [vmem:[%s3 + $0x1a8] sm:$0xff]
    %v178 = vld [vmem:[%s3 + $0x1b0] sm:$0xff]
    %v179 = vld [vmem:[%s3 + $0x1b8] sm:$0xff]
    %v180 = vld [vmem:[%s3 + $0x1c0] sm:$0xff]
    %v181 = vld [vmem:[%s3 + $0x1c8] sm:$0xff]
    %v182 = vld [vmem:[%s3 + $0x1d0] sm:$0xff]
    %v183 = vld [vmem:[%s3 + $0x1d8] sm:$0xff]
    %v184 = vld [vmem:[%s3 + $0x1e0] sm:$0xff]
    %v185 = vld [vmem:[%s3 + $0x1e8] sm:$0xff]
    %v186 = vld [vmem:[%s3 + $0x1f0] sm:$0xff]
    %v187 = vld [vmem:[%s3 + $0x1f8] sm:$0xff]
    %v188 = vld [vmem:[%s3 + $0x200] sm:$0xff]
    %v189 = vld [vmem:[%s3 + $0x208] sm:$0xff]
    %v190 = vld [vmem:[%s3 + $0x210] sm:$0xff]
    %v191 = vld [vmem:[%s3 + $0x218] sm:$0xff]
    %v192 = vld [vmem:[%s3 + $0x220] sm:$0xff]
    %v193 = vld [vmem:[%s3 + $0x228] sm:$0xff]
    %v194 = vld [vmem:[%s3 + $0x230] sm:$0xff]
    %v195 = vld [vmem:[%s3 + $0x238] sm:$0xff]
    %v196 = vld [vmem:[%s3 + $0x240] sm:$0x3]
    %vm197 = vcmask 539648
    %v199 = vsel %vm197, %v118, 0
    %v202 = vsel %vm197, %v123, 0
    %vm204 = vcmask 1041408
    %v206 = vsel %vm204, %v196, 0
    %v208 = vand.u32 %v139, 4294901760
    %209 = vmatpush.msra.mxu0 %v208
    %v210 = vand.u32 %v138, 4294901760
    %211 = vmatpush.msra.mxu0 %v210
    %v212 = vand.u32 %v137, 4294901760
    %213 = vmatpush.msra.mxu0 %v212
    %v214 = vand.u32 %v136, 4294901760
    %215 = vmatpush.msra.mxu0 %v214
    %v216 = vand.u32 %v135, 4294901760
    %217 = vmatpush.msra.mxu0 %v216
    %v218 = vand.u32 %v134, 4294901760
    %219 = vmatpush.msra.mxu0 %v218
    %v220 = vand.u32 %v133, 4294901760
    %221 = vmatpush.msra.mxu0 %v220
    %v222 = vand.u32 %v132, 4294901760
    %223 = vmatpush.msra.mxu0 %v222
    %v224 = vand.u32 %v131, 4294901760
    %225 = vmatpush.msra.mxu0 %v224
    %v226 = vand.u32 %v130, 4294901760
    %227 = vmatpush.msra.mxu0 %v226
    %v228 = vand.u32 %v129, 4294901760
    %229 = vmatpush.msra.mxu0 %v228
    %v230 = vand.u32 %v128, 4294901760
    %231 = vmatpush.msra.mxu0 %v230
    %v232 = vand.u32 %v127, 4294901760
    %233 = vmatpush.msra.mxu0 %v232
    %v234 = vand.u32 %v126, 4294901760
    %235 = vmatpush.msra.mxu0 %v234
    %v236 = vand.u32 %v125, 4294901760
    %237 = vmatpush.msra.mxu0 %v236
    %v238 = vand.u32 %v124, 4294901760
    %239 = vmatpush.msra.mxu0 %v238
    %v240 = vand.u32 %v114, 4294901760
    %v241 = vsub.f32 %v114, %v240
    %v242 = vand.u32 %v241, 4294901760
    %v243 = vsub.f32 %v241, %v242
    %v244 = vand.u32 %v243, 4294901760
    %245 = vmatmul.f32.gmra.mxu0 %v244
    %v246 = vpop.f32.mrf.mxu0
    %v247 = vadd.f32 0.0, %v246
    %v248 = vand.u32 %v119, 4294901760
    %v249 = vsub.f32 %v119, %v248
    %v250 = vand.u32 %v249, 4294901760
    %v251 = vsub.f32 %v249, %v250
    %v252 = vand.u32 %v251, 4294901760
    %253 = vmatmul.f32.gmra.mxu0 %v252
    %v254 = vpop.f32.mrf.mxu0
    %v255 = vadd.f32 0.0, %v254
    %256 = vdwg.mxu0
    %v257 = vand.u32 %v139, 4294901760
    %v258 = vsub.f32 %v139, %v257
    %v259 = vand.u32 %v258, 4294901760
    %v260 = vsub.f32 %v258, %v259
    %v261 = vand.u32 %v260, 4294901760
    %262 = vmatpush.msra.mxu0 %v261
    %v263 = vand.u32 %v138, 4294901760
    %v264 = vsub.f32 %v138, %v263
    %v265 = vand.u32 %v264, 4294901760
    %v266 = vsub.f32 %v264, %v265
    %v267 = vand.u32 %v266, 4294901760
    %268 = vmatpush.msra.mxu0 %v267
    %v269 = vand.u32 %v137, 4294901760
    %v270 = vsub.f32 %v137, %v269
    %v271 = vand.u32 %v270, 4294901760
    %v272 = vsub.f32 %v270, %v271
    %v273 = vand.u32 %v272, 4294901760
    %274 = vmatpush.msra.mxu0 %v273
    %v275 = vand.u32 %v136, 4294901760
    %v276 = vsub.f32 %v136, %v275
    %v277 = vand.u32 %v276, 4294901760
    %v278 = vsub.f32 %v276, %v277
    %v279 = vand.u32 %v278, 4294901760
    %280 = vmatpush.msra.mxu0 %v279
    %v281 = vand.u32 %v135, 4294901760
    %v282 = vsub.f32 %v135, %v281
    %v283 = vand.u32 %v282, 4294901760
    %v284 = vsub.f32 %v282, %v283
    %v285 = vand.u32 %v284, 4294901760
    %286 = vmatpush.msra.mxu0 %v285
    %v287 = vand.u32 %v134, 4294901760
    %v288 = vsub.f32 %v134, %v287
    %v289 = vand.u32 %v288, 4294901760
    %v290 = vsub.f32 %v288, %v289
    %v291 = vand.u32 %v290, 4294901760
    %292 = vmatpush.msra.mxu0 %v291
    %v293 = vand.u32 %v133, 4294901760
    %v294 = vsub.f32 %v133, %v293
    %v295 = vand.u32 %v294, 4294901760
    %v296 = vsub.f32 %v294, %v295
    %v297 = vand.u32 %v296, 4294901760
    %298 = vmatpush.msra.mxu0 %v297
    %v299 = vand.u32 %v132, 4294901760
    %v300 = vsub.f32 %v132, %v299
    %v301 = vand.u32 %v300, 4294901760
    %v302 = vsub.f32 %v300, %v301
    %v303 = vand.u32 %v302, 4294901760
    %304 = vmatpush.msra.mxu0 %v303
    %v305 = vand.u32 %v131, 4294901760
    %v306 = vsub.f32 %v131, %v305
    %v307 = vand.u32 %v306, 4294901760
    %v308 = vsub.f32 %v306, %v307
    %v309 = vand.u32 %v308, 4294901760
    %310 = vmatpush.msra.mxu0 %v309
    %v311 = vand.u32 %v130, 4294901760
    %v312 = vsub.f32 %v130, %v311
    %v313 = vand.u32 %v312, 4294901760
    %v314 = vsub.f32 %v312, %v313
    %v315 = vand.u32 %v314, 4294901760
    %316 = vmatpush.msra.mxu0 %v315
    %v317 = vand.u32 %v129, 4294901760
    %v318 = vsub.f32 %v129, %v317
    %v319 = vand.u32 %v318, 4294901760
    %v320 = vsub.f32 %v318, %v319
    %v321 = vand.u32 %v320, 4294901760
    %322 = vmatpush.msra.mxu0 %v321
    %v323 = vand.u32 %v128, 4294901760
    %v324 = vsub.f32 %v128, %v323
    %v325 = vand.u32 %v324, 4294901760
    %v326 = vsub.f32 %v324, %v325
    %v327 = vand.u32 %v326, 4294901760
    %328 = vmatpush.msra.mxu0 %v327
    %v329 = vand.u32 %v127, 4294901760
    %v330 = vsub.f32 %v127, %v329
    %v331 = vand.u32 %v330, 4294901760
    %v332 = vsub.f32 %v330, %v331
    %v333 = vand.u32 %v332, 4294901760
    %334 = vmatpush.msra.mxu0 %v333
    %v335 = vand.u32 %v126, 4294901760
    %v336 = vsub.f32 %v126, %v335
    %v337 = vand.u32 %v336, 4294901760
    %v338 = vsub.f32 %v336, %v337
    %v339 = vand.u32 %v338, 4294901760
    %340 = vmatpush.msra.mxu0 %v339
    %v341 = vand.u32 %v125, 4294901760
    %v342 = vsub.f32 %v125, %v341
    %v343 = vand.u32 %v342, 4294901760
    %v344 = vsub.f32 %v342, %v343
    %v345 = vand.u32 %v344, 4294901760
    %346 = vmatpush.msra.mxu0 %v345
    %v347 = vand.u32 %v124, 4294901760
    %v348 = vsub.f32 %v124, %v347
    %v349 = vand.u32 %v348, 4294901760
    %v350 = vsub.f32 %v348, %v349
    %v351 = vand.u32 %v350, 4294901760
    %352 = vmatpush.msra.mxu0 %v351
    %v353 = vand.u32 %v114, 4294901760
    %354 = vmatmul.f32.gmra.mxu0 %v353
    %v355 = vpop.f32.mrf.mxu0
    %v356 = vadd.f32 %v247, %v355
    %v357 = vand.u32 %v119, 4294901760
    %358 = vmatmul.f32.gmra.mxu0 %v357
    %v359 = vpop.f32.mrf.mxu0
    %v360 = vadd.f32 %v255, %v359
    %361 = vdwg.mxu0
    %v362 = vand.u32 %v139, 4294901760
    %v363 = vsub.f32 %v139, %v362
    %364 = vmatpush.msra.mxu0 %v363
    %v365 = vand.u32 %v138, 4294901760
    %v366 = vsub.f32 %v138, %v365
    %367 = vmatpush.msra.mxu0 %v366
    %v368 = vand.u32 %v137, 4294901760
    %v369 = vsub.f32 %v137, %v368
    %370 = vmatpush.msra.mxu0 %v369
    %v371 = vand.u32 %v136, 4294901760
    %v372 = vsub.f32 %v136, %v371
    %373 = vmatpush.msra.mxu0 %v372
    %v374 = vand.u32 %v135, 4294901760
    %v375 = vsub.f32 %v135, %v374
    %376 = vmatpush.msra.mxu0 %v375
    %v377 = vand.u32 %v134, 4294901760
    %v378 = vsub.f32 %v134, %v377
    %379 = vmatpush.msra.mxu0 %v378
    %v380 = vand.u32 %v133, 4294901760
    %v381 = vsub.f32 %v133, %v380
    %382 = vmatpush.msra.mxu0 %v381
    %v383 = vand.u32 %v132, 4294901760
    %v384 = vsub.f32 %v132, %v383
    %385 = vmatpush.msra.mxu0 %v384
    %v386 = vand.u32 %v131, 4294901760
    %v387 = vsub.f32 %v131, %v386
    %388 = vmatpush.msra.mxu0 %v387
    %v389 = vand.u32 %v130, 4294901760
    %v390 = vsub.f32 %v130, %v389
    %391 = vmatpush.msra.mxu0 %v390
    %v392 = vand.u32 %v129, 4294901760
    %v393 = vsub.f32 %v129, %v392
    %394 = vmatpush.msra.mxu0 %v393
    %v395 = vand.u32 %v128, 4294901760
    %v396 = vsub.f32 %v128, %v395
    %397 = vmatpush.msra.mxu0 %v396
    %v398 = vand.u32 %v127, 4294901760
    %v399 = vsub.f32 %v127, %v398
    %400 = vmatpush.msra.mxu0 %v399
    %v401 = vand.u32 %v126, 4294901760
    %v402 = vsub.f32 %v126, %v401
    %403 = vmatpush.msra.mxu0 %v402
    %v404 = vand.u32 %v125, 4294901760
    %v405 = vsub.f32 %v125, %v404
    %406 = vmatpush.msra.mxu0 %v405
    %v407 = vand.u32 %v124, 4294901760
    %v408 = vsub.f32 %v124, %v407
    %409 = vmatpush.msra.mxu0 %v408
    %v410 = vand.u32 %v114, 4294901760
    %v411 = vsub.f32 %v114, %v410
    %412 = vmatmul.f32.gmra.mxu0 %v411
    %v413 = vpop.f32.mrf.mxu0
    %v414 = vadd.f32 %v356, %v413
    %v415 = vand.u32 %v119, 4294901760
    %v416 = vsub.f32 %v119, %v415
    %417 = vmatmul.f32.gmra.mxu0 %v416
    %v418 = vpop.f32.mrf.mxu0
    %v419 = vadd.f32 %v360, %v418
    %420 = vdwg.mxu0
    %v421 = vand.u32 %v139, 4294901760
    %422 = vmatpush.msra.mxu0 %v421
    %v423 = vand.u32 %v138, 4294901760
    %424 = vmatpush.msra.mxu0 %v423
    %v425 = vand.u32 %v137, 4294901760
    %426 = vmatpush.msra.mxu0 %v425
    %v427 = vand.u32 %v136, 4294901760
    %428 = vmatpush.msra.mxu0 %v427
    %v429 = vand.u32 %v135, 4294901760
    %430 = vmatpush.msra.mxu0 %v429
    %v431 = vand.u32 %v134, 4294901760
    %432 = vmatpush.msra.mxu0 %v431
    %v433 = vand.u32 %v133, 4294901760
    %434 = vmatpush.msra.mxu0 %v433
    %v435 = vand.u32 %v132, 4294901760
    %436 = vmatpush.msra.mxu0 %v435
    %v437 = vand.u32 %v131, 4294901760
    %438 = vmatpush.msra.mxu0 %v437
    %v439 = vand.u32 %v130, 4294901760
    %440 = vmatpush.msra.mxu0 %v439
    %v441 = vand.u32 %v129, 4294901760
    %442 = vmatpush.msra.mxu0 %v441
    %v443 = vand.u32 %v128, 4294901760
    %444 = vmatpush.msra.mxu0 %v443
    %v445 = vand.u32 %v127, 4294901760
    %446 = vmatpush.msra.mxu0 %v445
    %v447 = vand.u32 %v126, 4294901760
    %448 = vmatpush.msra.mxu0 %v447
    %v449 = vand.u32 %v125, 4294901760
    %450 = vmatpush.msra.mxu0 %v449
    %v451 = vand.u32 %v124, 4294901760
    %452 = vmatpush.msra.mxu0 %v451
    %v453 = vand.u32 %v114, 4294901760
    %v454 = vsub.f32 %v114, %v453
    %v455 = vand.u32 %v454, 4294901760
    %456 = vmatmul.f32.gmra.mxu0 %v455
    %v457 = vpop.f32.mrf.mxu0
    %v458 = vadd.f32 %v414, %v457
    %v459 = vand.u32 %v119, 4294901760
    %v460 = vsub.f32 %v119, %v459
    %v461 = vand.u32 %v460, 4294901760
    %462 = vmatmul.f32.gmra.mxu0 %v461
    %v463 = vpop.f32.mrf.mxu0
    %v464 = vadd.f32 %v419, %v463
    %465 = vdwg.mxu0
    %v466 = vand.u32 %v139, 4294901760
    %v467 = vsub.f32 %v139, %v466
    %v468 = vand.u32 %v467, 4294901760
    %469 = vmatpush.msra.mxu0 %v468
    %v470 = vand.u32 %v138, 4294901760
    %v471 = vsub.f32 %v138, %v470
    %v472 = vand.u32 %v471, 4294901760
    %473 = vmatpush.msra.mxu0 %v472
    %v474 = vand.u32 %v137, 4294901760
    %v475 = vsub.f32 %v137, %v474
    %v476 = vand.u32 %v475, 4294901760
    %477 = vmatpush.msra.mxu0 %v476
    %v478 = vand.u32 %v136, 4294901760
    %v479 = vsub.f32 %v136, %v478
    %v480 = vand.u32 %v479, 4294901760
    %481 = vmatpush.msra.mxu0 %v480
    %v482 = vand.u32 %v135, 4294901760
    %v483 = vsub.f32 %v135, %v482
    %v484 = vand.u32 %v483, 4294901760
    %485 = vmatpush.msra.mxu0 %v484
    %v486 = vand.u32 %v134, 4294901760
    %v487 = vsub.f32 %v134, %v486
    %v488 = vand.u32 %v487, 4294901760
    %489 = vmatpush.msra.mxu0 %v488
    %v490 = vand.u32 %v133, 4294901760
    %v491 = vsub.f32 %v133, %v490
    %v492 = vand.u32 %v491, 4294901760
    %493 = vmatpush.msra.mxu0 %v492
    %v494 = vand.u32 %v132, 4294901760
    %v495 = vsub.f32 %v132, %v494
    %v496 = vand.u32 %v495, 4294901760
    %497 = vmatpush.msra.mxu0 %v496
    %v498 = vand.u32 %v131, 4294901760
    %v499 = vsub.f32 %v131, %v498
    %v500 = vand.u32 %v499, 4294901760
    %501 = vmatpush.msra.mxu0 %v500
    %v502 = vand.u32 %v130, 4294901760
    %v503 = vsub.f32 %v130, %v502
    %v504 = vand.u32 %v503, 4294901760
    %505 = vmatpush.msra.mxu0 %v504
    %v506 = vand.u32 %v129, 4294901760
    %v507 = vsub.f32 %v129, %v506
    %v508 = vand.u32 %v507, 4294901760
    %509 = vmatpush.msra.mxu0 %v508
    %v510 = vand.u32 %v128, 4294901760
    %v511 = vsub.f32 %v128, %v510
    %v512 = vand.u32 %v511, 4294901760
    %513 = vmatpush.msra.mxu0 %v512
    %v514 = vand.u32 %v127, 4294901760
    %v515 = vsub.f32 %v127, %v514
    %v516 = vand.u32 %v515, 4294901760
    %517 = vmatpush.msra.mxu0 %v516
    %v518 = vand.u32 %v126, 4294901760
    %v519 = vsub.f32 %v126, %v518
    %v520 = vand.u32 %v519, 4294901760
    %521 = vmatpush.msra.mxu0 %v520
    %v522 = vand.u32 %v125, 4294901760
    %v523 = vsub.f32 %v125, %v522
    %v524 = vand.u32 %v523, 4294901760
    %525 = vmatpush.msra.mxu0 %v524
    %v526 = vand.u32 %v124, 4294901760
    %v527 = vsub.f32 %v124, %v526
    %v528 = vand.u32 %v527, 4294901760
    %529 = vmatpush.msra.mxu0 %v528
    %v530 = vand.u32 %v114, 4294901760
    %531 = vmatmul.f32.gmra.mxu0 %v530
    %v532 = vpop.f32.mrf.mxu0
    %v533 = vadd.f32 %v458, %v532
    %v534 = vand.u32 %v119, 4294901760
    %535 = vmatmul.f32.gmra.mxu0 %v534
    %v536 = vpop.f32.mrf.mxu0
    %v537 = vadd.f32 %v464, %v536
    %538 = vdwg.mxu0
    %v539 = vand.u32 %v139, 4294901760
    %540 = vmatpush.msra.mxu0 %v539
    %v541 = vand.u32 %v138, 4294901760
    %542 = vmatpush.msra.mxu0 %v541
    %v543 = vand.u32 %v137, 4294901760
    %544 = vmatpush.msra.mxu0 %v543
    %v545 = vand.u32 %v136, 4294901760
    %546 = vmatpush.msra.mxu0 %v545
    %v547 = vand.u32 %v135, 4294901760
    %548 = vmatpush.msra.mxu0 %v547
    %v549 = vand.u32 %v134, 4294901760
    %550 = vmatpush.msra.mxu0 %v549
    %v551 = vand.u32 %v133, 4294901760
    %552 = vmatpush.msra.mxu0 %v551
    %v553 = vand.u32 %v132, 4294901760
    %554 = vmatpush.msra.mxu0 %v553
    %v555 = vand.u32 %v131, 4294901760
    %556 = vmatpush.msra.mxu0 %v555
    %v557 = vand.u32 %v130, 4294901760
    %558 = vmatpush.msra.mxu0 %v557
    %v559 = vand.u32 %v129, 4294901760
    %560 = vmatpush.msra.mxu0 %v559
    %v561 = vand.u32 %v128, 4294901760
    %562 = vmatpush.msra.mxu0 %v561
    %v563 = vand.u32 %v127, 4294901760
    %564 = vmatpush.msra.mxu0 %v563
    %v565 = vand.u32 %v126, 4294901760
    %566 = vmatpush.msra.mxu0 %v565
    %v567 = vand.u32 %v125, 4294901760
    %568 = vmatpush.msra.mxu0 %v567
    %v569 = vand.u32 %v124, 4294901760
    %570 = vmatpush.msra.mxu0 %v569
    %v571 = vand.u32 %v114, 4294901760
    %572 = vmatmul.f32.gmra.mxu0 %v571
    %v573 = vpop.f32.mrf.mxu0
    %v574 = vadd.f32 %v533, %v573
    %v575 = vand.u32 %v119, 4294901760
    %576 = vmatmul.f32.gmra.mxu0 %v575
    %v577 = vpop.f32.mrf.mxu0
    %v578 = vadd.f32 %v537, %v577
    %579 = vdwg.mxu0
    %v580 = vand.u32 %v155, 4294901760
    %581 = vmatpush.msra.mxu0 %v580
    %v582 = vand.u32 %v154, 4294901760
    %583 = vmatpush.msra.mxu0 %v582
    %v584 = vand.u32 %v153, 4294901760
    %585 = vmatpush.msra.mxu0 %v584
    %v586 = vand.u32 %v152, 4294901760
    %587 = vmatpush.msra.mxu0 %v586
    %v588 = vand.u32 %v151, 4294901760
    %589 = vmatpush.msra.mxu0 %v588
    %v590 = vand.u32 %v150, 4294901760
    %591 = vmatpush.msra.mxu0 %v590
    %v592 = vand.u32 %v149, 4294901760
    %593 = vmatpush.msra.mxu0 %v592
    %v594 = vand.u32 %v148, 4294901760
    %595 = vmatpush.msra.mxu0 %v594
    %v596 = vand.u32 %v147, 4294901760
    %597 = vmatpush.msra.mxu0 %v596
    %v598 = vand.u32 %v146, 4294901760
    %599 = vmatpush.msra.mxu0 %v598
    %v600 = vand.u32 %v145, 4294901760
    %601 = vmatpush.msra.mxu0 %v600
    %v602 = vand.u32 %v144, 4294901760
    %603 = vmatpush.msra.mxu0 %v602
    %v604 = vand.u32 %v143, 4294901760
    %605 = vmatpush.msra.mxu0 %v604
    %v606 = vand.u32 %v142, 4294901760
    %607 = vmatpush.msra.mxu0 %v606
    %v608 = vand.u32 %v141, 4294901760
    %609 = vmatpush.msra.mxu0 %v608
    %v610 = vand.u32 %v140, 4294901760
    %611 = vmatpush.msra.mxu0 %v610
    %v612 = vand.u32 %v115, 4294901760
    %v613 = vsub.f32 %v115, %v612
    %v614 = vand.u32 %v613, 4294901760
    %v615 = vsub.f32 %v613, %v614
    %v616 = vand.u32 %v615, 4294901760
    %617 = vmatmul.f32.gmra.mxu0 %v616
    %v618 = vpop.f32.mrf.mxu0
    %v619 = vadd.f32 %v574, %v618
    %v620 = vand.u32 %v120, 4294901760
    %v621 = vsub.f32 %v120, %v620
    %v622 = vand.u32 %v621, 4294901760
    %v623 = vsub.f32 %v621, %v622
    %v624 = vand.u32 %v623, 4294901760
    %625 = vmatmul.f32.gmra.mxu0 %v624
    %v626 = vpop.f32.mrf.mxu0
    %v627 = vadd.f32 %v578, %v626
    %628 = vdwg.mxu0
    %v629 = vand.u32 %v155, 4294901760
    %v630 = vsub.f32 %v155, %v629
    %v631 = vand.u32 %v630, 4294901760
    %v632 = vsub.f32 %v630, %v631
    %v633 = vand.u32 %v632, 4294901760
    %634 = vmatpush.msra.mxu0 %v633
    %v635 = vand.u32 %v154, 4294901760
    %v636 = vsub.f32 %v154, %v635
    %v637 = vand.u32 %v636, 4294901760
    %v638 = vsub.f32 %v636, %v637
    %v639 = vand.u32 %v638, 4294901760
    %640 = vmatpush.msra.mxu0 %v639
    %v641 = vand.u32 %v153, 4294901760
    %v642 = vsub.f32 %v153, %v641
    %v643 = vand.u32 %v642, 4294901760
    %v644 = vsub.f32 %v642, %v643
    %v645 = vand.u32 %v644, 4294901760
    %646 = vmatpush.msra.mxu0 %v645
    %v647 = vand.u32 %v152, 4294901760
    %v648 = vsub.f32 %v152, %v647
    %v649 = vand.u32 %v648, 4294901760
    %v650 = vsub.f32 %v648, %v649
    %v651 = vand.u32 %v650, 4294901760
    %652 = vmatpush.msra.mxu0 %v651
    %v653 = vand.u32 %v151, 4294901760
    %v654 = vsub.f32 %v151, %v653
    %v655 = vand.u32 %v654, 4294901760
    %v656 = vsub.f32 %v654, %v655
    %v657 = vand.u32 %v656, 4294901760
    %658 = vmatpush.msra.mxu0 %v657
    %v659 = vand.u32 %v150, 4294901760
    %v660 = vsub.f32 %v150, %v659
    %v661 = vand.u32 %v660, 4294901760
    %v662 = vsub.f32 %v660, %v661
    %v663 = vand.u32 %v662, 4294901760
    %664 = vmatpush.msra.mxu0 %v663
    %v665 = vand.u32 %v149, 4294901760
    %v666 = vsub.f32 %v149, %v665
    %v667 = vand.u32 %v666, 4294901760
    %v668 = vsub.f32 %v666, %v667
    %v669 = vand.u32 %v668, 4294901760
    %670 = vmatpush.msra.mxu0 %v669
    %v671 = vand.u32 %v148, 4294901760
    %v672 = vsub.f32 %v148, %v671
    %v673 = vand.u32 %v672, 4294901760
    %v674 = vsub.f32 %v672, %v673
    %v675 = vand.u32 %v674, 4294901760
    %676 = vmatpush.msra.mxu0 %v675
    %v677 = vand.u32 %v147, 4294901760
    %v678 = vsub.f32 %v147, %v677
    %v679 = vand.u32 %v678, 4294901760
    %v680 = vsub.f32 %v678, %v679
    %v681 = vand.u32 %v680, 4294901760
    %682 = vmatpush.msra.mxu0 %v681
    %v683 = vand.u32 %v146, 4294901760
    %v684 = vsub.f32 %v146, %v683
    %v685 = vand.u32 %v684, 4294901760
    %v686 = vsub.f32 %v684, %v685
    %v687 = vand.u32 %v686, 4294901760
    %688 = vmatpush.msra.mxu0 %v687
    %v689 = vand.u32 %v145, 4294901760
    %v690 = vsub.f32 %v145, %v689
    %v691 = vand.u32 %v690, 4294901760
    %v692 = vsub.f32 %v690, %v691
    %v693 = vand.u32 %v692, 4294901760
    %694 = vmatpush.msra.mxu0 %v693
    %v695 = vand.u32 %v144, 4294901760
    %v696 = vsub.f32 %v144, %v695
    %v697 = vand.u32 %v696, 4294901760
    %v698 = vsub.f32 %v696, %v697
    %v699 = vand.u32 %v698, 4294901760
    %700 = vmatpush.msra.mxu0 %v699
    %v701 = vand.u32 %v143, 4294901760
    %v702 = vsub.f32 %v143, %v701
    %v703 = vand.u32 %v702, 4294901760
    %v704 = vsub.f32 %v702, %v703
    %v705 = vand.u32 %v704, 4294901760
    %706 = vmatpush.msra.mxu0 %v705
    %v707 = vand.u32 %v142, 4294901760
    %v708 = vsub.f32 %v142, %v707
    %v709 = vand.u32 %v708, 4294901760
    %v710 = vsub.f32 %v708, %v709
    %v711 = vand.u32 %v710, 4294901760
    %712 = vmatpush.msra.mxu0 %v711
    %v713 = vand.u32 %v141, 4294901760
    %v714 = vsub.f32 %v141, %v713
    %v715 = vand.u32 %v714, 4294901760
    %v716 = vsub.f32 %v714, %v715
    %v717 = vand.u32 %v716, 4294901760
    %718 = vmatpush.msra.mxu0 %v717
    %v719 = vand.u32 %v140, 4294901760
    %v720 = vsub.f32 %v140, %v719
    %v721 = vand.u32 %v720, 4294901760
    %v722 = vsub.f32 %v720, %v721
    %v723 = vand.u32 %v722, 4294901760
    %724 = vmatpush.msra.mxu0 %v723
    %v725 = vand.u32 %v115, 4294901760
    %726 = vmatmul.f32.gmra.mxu0 %v725
    %v727 = vpop.f32.mrf.mxu0
    %v728 = vadd.f32 %v619, %v727
    %v729 = vand.u32 %v120, 4294901760
    %730 = vmatmul.f32.gmra.mxu0 %v729
    %v731 = vpop.f32.mrf.mxu0
    %v732 = vadd.f32 %v627, %v731
    %733 = vdwg.mxu0
    %v734 = vand.u32 %v155, 4294901760
    %v735 = vsub.f32 %v155, %v734
    %736 = vmatpush.msra.mxu0 %v735
    %v737 = vand.u32 %v154, 4294901760
    %v738 = vsub.f32 %v154, %v737
    %739 = vmatpush.msra.mxu0 %v738
    %v740 = vand.u32 %v153, 4294901760
    %v741 = vsub.f32 %v153, %v740
    %742 = vmatpush.msra.mxu0 %v741
    %v743 = vand.u32 %v152, 4294901760
    %v744 = vsub.f32 %v152, %v743
    %745 = vmatpush.msra.mxu0 %v744
    %v746 = vand.u32 %v151, 4294901760
    %v747 = vsub.f32 %v151, %v746
    %748 = vmatpush.msra.mxu0 %v747
    %v749 = vand.u32 %v150, 4294901760
    %v750 = vsub.f32 %v150, %v749
    %751 = vmatpush.msra.mxu0 %v750
    %v752 = vand.u32 %v149, 4294901760
    %v753 = vsub.f32 %v149, %v752
    %754 = vmatpush.msra.mxu0 %v753
    %v755 = vand.u32 %v148, 4294901760
    %v756 = vsub.f32 %v148, %v755
    %757 = vmatpush.msra.mxu0 %v756
    %v758 = vand.u32 %v147, 4294901760
    %v759 = vsub.f32 %v147, %v758
    %760 = vmatpush.msra.mxu0 %v759
    %v761 = vand.u32 %v146, 4294901760
    %v762 = vsub.f32 %v146, %v761
    %763 = vmatpush.msra.mxu0 %v762
    %v764 = vand.u32 %v145, 4294901760
    %v765 = vsub.f32 %v145, %v764
    %766 = vmatpush.msra.mxu0 %v765
    %v767 = vand.u32 %v144, 4294901760
    %v768 = vsub.f32 %v144, %v767
    %769 = vmatpush.msra.mxu0 %v768
    %v770 = vand.u32 %v143, 4294901760
    %v771 = vsub.f32 %v143, %v770
    %772 = vmatpush.msra.mxu0 %v771
    %v773 = vand.u32 %v142, 4294901760
    %v774 = vsub.f32 %v142, %v773
    %775 = vmatpush.msra.mxu0 %v774
    %v776 = vand.u32 %v141, 4294901760
    %v777 = vsub.f32 %v141, %v776
    %778 = vmatpush.msra.mxu0 %v777
    %v779 = vand.u32 %v140, 4294901760
    %v780 = vsub.f32 %v140, %v779
    %781 = vmatpush.msra.mxu0 %v780
    %v782 = vand.u32 %v115, 4294901760
    %v783 = vsub.f32 %v115, %v782
    %784 = vmatmul.f32.gmra.mxu0 %v783
    %v785 = vpop.f32.mrf.mxu0
    %v786 = vadd.f32 %v728, %v785
    %v787 = vand.u32 %v120, 4294901760
    %v788 = vsub.f32 %v120, %v787
    %789 = vmatmul.f32.gmra.mxu0 %v788
    %v790 = vpop.f32.mrf.mxu0
    %v791 = vadd.f32 %v732, %v790
    %792 = vdwg.mxu0
    %v793 = vand.u32 %v155, 4294901760
    %794 = vmatpush.msra.mxu0 %v793
    %v795 = vand.u32 %v154, 4294901760
    %796 = vmatpush.msra.mxu0 %v795
    %v797 = vand.u32 %v153, 4294901760
    %798 = vmatpush.msra.mxu0 %v797
    %v799 = vand.u32 %v152, 4294901760
    %800 = vmatpush.msra.mxu0 %v799
    %v801 = vand.u32 %v151, 4294901760
    %802 = vmatpush.msra.mxu0 %v801
    %v803 = vand.u32 %v150, 4294901760
    %804 = vmatpush.msra.mxu0 %v803
    %v805 = vand.u32 %v149, 4294901760
    %806 = vmatpush.msra.mxu0 %v805
    %v807 = vand.u32 %v148, 4294901760
    %808 = vmatpush.msra.mxu0 %v807
    %v809 = vand.u32 %v147, 4294901760
    %810 = vmatpush.msra.mxu0 %v809
    %v811 = vand.u32 %v146, 4294901760
    %812 = vmatpush.msra.mxu0 %v811
    %v813 = vand.u32 %v145, 4294901760
    %814 = vmatpush.msra.mxu0 %v813
    %v815 = vand.u32 %v144, 4294901760
    %816 = vmatpush.msra.mxu0 %v815
    %v817 = vand.u32 %v143, 4294901760
    %818 = vmatpush.msra.mxu0 %v817
    %v819 = vand.u32 %v142, 4294901760
    %820 = vmatpush.msra.mxu0 %v819
    %v821 = vand.u32 %v141, 4294901760
    %822 = vmatpush.msra.mxu0 %v821
    %v823 = vand.u32 %v140, 4294901760
    %824 = vmatpush.msra.mxu0 %v823
    %v825 = vand.u32 %v115, 4294901760
    %v826 = vsub.f32 %v115, %v825
    %v827 = vand.u32 %v826, 4294901760
    %828 = vmatmul.f32.gmra.mxu0 %v827
    %v829 = vpop.f32.mrf.mxu0
    %v830 = vadd.f32 %v786, %v829
    %v831 = vand.u32 %v120, 4294901760
    %v832 = vsub.f32 %v120, %v831
    %v833 = vand.u32 %v832, 4294901760
    %834 = vmatmul.f32.gmra.mxu0 %v833
    %v835 = vpop.f32.mrf.mxu0
    %v836 = vadd.f32 %v791, %v835
    %837 = vdwg.mxu0
    %v838 = vand.u32 %v155, 4294901760
    %v839 = vsub.f32 %v155, %v838
    %v840 = vand.u32 %v839, 4294901760
    %841 = vmatpush.msra.mxu0 %v840
    %v842 = vand.u32 %v154, 4294901760
    %v843 = vsub.f32 %v154, %v842
    %v844 = vand.u32 %v843, 4294901760
    %845 = vmatpush.msra.mxu0 %v844
    %v846 = vand.u32 %v153, 4294901760
    %v847 = vsub.f32 %v153, %v846
    %v848 = vand.u32 %v847, 4294901760
    %849 = vmatpush.msra.mxu0 %v848
    %v850 = vand.u32 %v152, 4294901760
    %v851 = vsub.f32 %v152, %v850
    %v852 = vand.u32 %v851, 4294901760
    %853 = vmatpush.msra.mxu0 %v852
    %v854 = vand.u32 %v151, 4294901760
    %v855 = vsub.f32 %v151, %v854
    %v856 = vand.u32 %v855, 4294901760
    %857 = vmatpush.msra.mxu0 %v856
    %v858 = vand.u32 %v150, 4294901760
    %v859 = vsub.f32 %v150, %v858
    %v860 = vand.u32 %v859, 4294901760
    %861 = vmatpush.msra.mxu0 %v860
    %v862 = vand.u32 %v149, 4294901760
    %v863 = vsub.f32 %v149, %v862
    %v864 = vand.u32 %v863, 4294901760
    %865 = vmatpush.msra.mxu0 %v864
    %v866 = vand.u32 %v148, 4294901760
    %v867 = vsub.f32 %v148, %v866
    %v868 = vand.u32 %v867, 4294901760
    %869 = vmatpush.msra.mxu0 %v868
    %v870 = vand.u32 %v147, 4294901760
    %v871 = vsub.f32 %v147, %v870
    %v872 = vand.u32 %v871, 4294901760
    %873 = vmatpush.msra.mxu0 %v872
    %v874 = vand.u32 %v146, 4294901760
    %v875 = vsub.f32 %v146, %v874
    %v876 = vand.u32 %v875, 4294901760
    %877 = vmatpush.msra.mxu0 %v876
    %v878 = vand.u32 %v145, 4294901760
    %v879 = vsub.f32 %v145, %v878
    %v880 = vand.u32 %v879, 4294901760
    %881 = vmatpush.msra.mxu0 %v880
    %v882 = vand.u32 %v144, 4294901760
    %v883 = vsub.f32 %v144, %v882
    %v884 = vand.u32 %v883, 4294901760
    %885 = vmatpush.msra.mxu0 %v884
    %v886 = vand.u32 %v143, 4294901760
    %v887 = vsub.f32 %v143, %v886
    %v888 = vand.u32 %v887, 4294901760
    %889 = vmatpush.msra.mxu0 %v888
    %v890 = vand.u32 %v142, 4294901760
    %v891 = vsub.f32 %v142, %v890
    %v892 = vand.u32 %v891, 4294901760
    %893 = vmatpush.msra.mxu0 %v892
    %v894 = vand.u32 %v141, 4294901760
    %v895 = vsub.f32 %v141, %v894
    %v896 = vand.u32 %v895, 4294901760
    %897 = vmatpush.msra.mxu0 %v896
    %v898 = vand.u32 %v140, 4294901760
    %v899 = vsub.f32 %v140, %v898
    %v900 = vand.u32 %v899, 4294901760
    %901 = vmatpush.msra.mxu0 %v900
    %v902 = vand.u32 %v115, 4294901760
    %903 = vmatmul.f32.gmra.mxu0 %v902
    %v904 = vpop.f32.mrf.mxu0
    %v905 = vadd.f32 %v830, %v904
    %v906 = vand.u32 %v120, 4294901760
    %907 = vmatmul.f32.gmra.mxu0 %v906
    %v908 = vpop.f32.mrf.mxu0
    %v909 = vadd.f32 %v836, %v908
    %910 = vdwg.mxu0
    %v911 = vand.u32 %v155, 4294901760
    %912 = vmatpush.msra.mxu0 %v911
    %v913 = vand.u32 %v154, 4294901760
    %914 = vmatpush.msra.mxu0 %v913
    %v915 = vand.u32 %v153, 4294901760
    %916 = vmatpush.msra.mxu0 %v915
    %v917 = vand.u32 %v152, 4294901760
    %918 = vmatpush.msra.mxu0 %v917
    %v919 = vand.u32 %v151, 4294901760
    %920 = vmatpush.msra.mxu0 %v919
    %v921 = vand.u32 %v150, 4294901760
    %922 = vmatpush.msra.mxu0 %v921
    %v923 = vand.u32 %v149, 4294901760
    %924 = vmatpush.msra.mxu0 %v923
    %v925 = vand.u32 %v148, 4294901760
    %926 = vmatpush.msra.mxu0 %v925
    %v927 = vand.u32 %v147, 4294901760
    %928 = vmatpush.msra.mxu0 %v927
    %v929 = vand.u32 %v146, 4294901760
    %930 = vmatpush.msra.mxu0 %v929
    %v931 = vand.u32 %v145, 4294901760
    %932 = vmatpush.msra.mxu0 %v931
    %v933 = vand.u32 %v144, 4294901760
    %934 = vmatpush.msra.mxu0 %v933
    %v935 = vand.u32 %v143, 4294901760
    %936 = vmatpush.msra.mxu0 %v935
    %v937 = vand.u32 %v142, 4294901760
    %938 = vmatpush.msra.mxu0 %v937
    %v939 = vand.u32 %v141, 4294901760
    %940 = vmatpush.msra.mxu0 %v939
    %v941 = vand.u32 %v140, 4294901760
    %942 = vmatpush.msra.mxu0 %v941
    %v943 = vand.u32 %v115, 4294901760
    %944 = vmatmul.f32.gmra.mxu0 %v943
    %v945 = vpop.f32.mrf.mxu0
    %v946 = vadd.f32 %v905, %v945
    %v947 = vand.u32 %v120, 4294901760
    %948 = vmatmul.f32.gmra.mxu0 %v947
    %v949 = vpop.f32.mrf.mxu0
    %v950 = vadd.f32 %v909, %v949
    %951 = vdwg.mxu0
    %v952 = vand.u32 %v171, 4294901760
    %953 = vmatpush.msra.mxu0 %v952
    %v954 = vand.u32 %v170, 4294901760
    %955 = vmatpush.msra.mxu0 %v954
    %v956 = vand.u32 %v169, 4294901760
    %957 = vmatpush.msra.mxu0 %v956
    %v958 = vand.u32 %v168, 4294901760
    %959 = vmatpush.msra.mxu0 %v958
    %v960 = vand.u32 %v167, 4294901760
    %961 = vmatpush.msra.mxu0 %v960
    %v962 = vand.u32 %v166, 4294901760
    %963 = vmatpush.msra.mxu0 %v962
    %v964 = vand.u32 %v165, 4294901760
    %965 = vmatpush.msra.mxu0 %v964
    %v966 = vand.u32 %v164, 4294901760
    %967 = vmatpush.msra.mxu0 %v966
    %v968 = vand.u32 %v163, 4294901760
    %969 = vmatpush.msra.mxu0 %v968
    %v970 = vand.u32 %v162, 4294901760
    %971 = vmatpush.msra.mxu0 %v970
    %v972 = vand.u32 %v161, 4294901760
    %973 = vmatpush.msra.mxu0 %v972
    %v974 = vand.u32 %v160, 4294901760
    %975 = vmatpush.msra.mxu0 %v974
    %v976 = vand.u32 %v159, 4294901760
    %977 = vmatpush.msra.mxu0 %v976
    %v978 = vand.u32 %v158, 4294901760
    %979 = vmatpush.msra.mxu0 %v978
    %v980 = vand.u32 %v157, 4294901760
    %981 = vmatpush.msra.mxu0 %v980
    %v982 = vand.u32 %v156, 4294901760
    %983 = vmatpush.msra.mxu0 %v982
    %v984 = vand.u32 %v116, 4294901760
    %v985 = vsub.f32 %v116, %v984
    %v986 = vand.u32 %v985, 4294901760
    %v987 = vsub.f32 %v985, %v986
    %v988 = vand.u32 %v987, 4294901760
    %989 = vmatmul.f32.gmra.mxu0 %v988
    %v990 = vpop.f32.mrf.mxu0
    %v991 = vadd.f32 %v946, %v990
    %v992 = vand.u32 %v121, 4294901760
    %v993 = vsub.f32 %v121, %v992
    %v994 = vand.u32 %v993, 4294901760
    %v995 = vsub.f32 %v993, %v994
    %v996 = vand.u32 %v995, 4294901760
    %997 = vmatmul.f32.gmra.mxu0 %v996
    %v998 = vpop.f32.mrf.mxu0
    %v999 = vadd.f32 %v950, %v998
    %1000 = vdwg.mxu0
    %v1001 = vand.u32 %v171, 4294901760
    %v1002 = vsub.f32 %v171, %v1001
    %v1003 = vand.u32 %v1002, 4294901760
    %v1004 = vsub.f32 %v1002, %v1003
    %v1005 = vand.u32 %v1004, 4294901760
    %1006 = vmatpush.msra.mxu0 %v1005
    %v1007 = vand.u32 %v170, 4294901760
    %v1008 = vsub.f32 %v170, %v1007
    %v1009 = vand.u32 %v1008, 4294901760
    %v1010 = vsub.f32 %v1008, %v1009
    %v1011 = vand.u32 %v1010, 4294901760
    %1012 = vmatpush.msra.mxu0 %v1011
    %v1013 = vand.u32 %v169, 4294901760
    %v1014 = vsub.f32 %v169, %v1013
    %v1015 = vand.u32 %v1014, 4294901760
    %v1016 = vsub.f32 %v1014, %v1015
    %v1017 = vand.u32 %v1016, 4294901760
    %1018 = vmatpush.msra.mxu0 %v1017
    %v1019 = vand.u32 %v168, 4294901760
    %v1020 = vsub.f32 %v168, %v1019
    %v1021 = vand.u32 %v1020, 4294901760
    %v1022 = vsub.f32 %v1020, %v1021
    %v1023 = vand.u32 %v1022, 4294901760
    %1024 = vmatpush.msra.mxu0 %v1023
    %v1025 = vand.u32 %v167, 4294901760
    %v1026 = vsub.f32 %v167, %v1025
    %v1027 = vand.u32 %v1026, 4294901760
    %v1028 = vsub.f32 %v1026, %v1027
    %v1029 = vand.u32 %v1028, 4294901760
    %1030 = vmatpush.msra.mxu0 %v1029
    %v1031 = vand.u32 %v166, 4294901760
    %v1032 = vsub.f32 %v166, %v1031
    %v1033 = vand.u32 %v1032, 4294901760
    %v1034 = vsub.f32 %v1032, %v1033
    %v1035 = vand.u32 %v1034, 4294901760
    %1036 = vmatpush.msra.mxu0 %v1035
    %v1037 = vand.u32 %v165, 4294901760
    %v1038 = vsub.f32 %v165, %v1037
    %v1039 = vand.u32 %v1038, 4294901760
    %v1040 = vsub.f32 %v1038, %v1039
    %v1041 = vand.u32 %v1040, 4294901760
    %1042 = vmatpush.msra.mxu0 %v1041
    %v1043 = vand.u32 %v164, 4294901760
    %v1044 = vsub.f32 %v164, %v1043
    %v1045 = vand.u32 %v1044, 4294901760
    %v1046 = vsub.f32 %v1044, %v1045
    %v1047 = vand.u32 %v1046, 4294901760
    %1048 = vmatpush.msra.mxu0 %v1047
    %v1049 = vand.u32 %v163, 4294901760
    %v1050 = vsub.f32 %v163, %v1049
    %v1051 = vand.u32 %v1050, 4294901760
    %v1052 = vsub.f32 %v1050, %v1051
    %v1053 = vand.u32 %v1052, 4294901760
    %1054 = vmatpush.msra.mxu0 %v1053
    %v1055 = vand.u32 %v162, 4294901760
    %v1056 = vsub.f32 %v162, %v1055
    %v1057 = vand.u32 %v1056, 4294901760
    %v1058 = vsub.f32 %v1056, %v1057
    %v1059 = vand.u32 %v1058, 4294901760
    %1060 = vmatpush.msra.mxu0 %v1059
    %v1061 = vand.u32 %v161, 4294901760
    %v1062 = vsub.f32 %v161, %v1061
    %v1063 = vand.u32 %v1062, 4294901760
    %v1064 = vsub.f32 %v1062, %v1063
    %v1065 = vand.u32 %v1064, 4294901760
    %1066 = vmatpush.msra.mxu0 %v1065
    %v1067 = vand.u32 %v160, 4294901760
    %v1068 = vsub.f32 %v160, %v1067
    %v1069 = vand.u32 %v1068, 4294901760
    %v1070 = vsub.f32 %v1068, %v1069
    %v1071 = vand.u32 %v1070, 4294901760
    %1072 = vmatpush.msra.mxu0 %v1071
    %v1073 = vand.u32 %v159, 4294901760
    %v1074 = vsub.f32 %v159, %v1073
    %v1075 = vand.u32 %v1074, 4294901760
    %v1076 = vsub.f32 %v1074, %v1075
    %v1077 = vand.u32 %v1076, 4294901760
    %1078 = vmatpush.msra.mxu0 %v1077
    %v1079 = vand.u32 %v158, 4294901760
    %v1080 = vsub.f32 %v158, %v1079
    %v1081 = vand.u32 %v1080, 4294901760
    %v1082 = vsub.f32 %v1080, %v1081
    %v1083 = vand.u32 %v1082, 4294901760
    %1084 = vmatpush.msra.mxu0 %v1083
    %v1085 = vand.u32 %v157, 4294901760
    %v1086 = vsub.f32 %v157, %v1085
    %v1087 = vand.u32 %v1086, 4294901760
    %v1088 = vsub.f32 %v1086, %v1087
    %v1089 = vand.u32 %v1088, 4294901760
    %1090 = vmatpush.msra.mxu0 %v1089
    %v1091 = vand.u32 %v156, 4294901760
    %v1092 = vsub.f32 %v156, %v1091
    %v1093 = vand.u32 %v1092, 4294901760
    %v1094 = vsub.f32 %v1092, %v1093
    %v1095 = vand.u32 %v1094, 4294901760
    %1096 = vmatpush.msra.mxu0 %v1095
    %v1097 = vand.u32 %v116, 4294901760
    %1098 = vmatmul.f32.gmra.mxu0 %v1097
    %v1099 = vpop.f32.mrf.mxu0
    %v1100 = vadd.f32 %v991, %v1099
    %v1101 = vand.u32 %v121, 4294901760
    %1102 = vmatmul.f32.gmra.mxu0 %v1101
    %v1103 = vpop.f32.mrf.mxu0
    %v1104 = vadd.f32 %v999, %v1103
    %1105 = vdwg.mxu0
    %v1106 = vand.u32 %v171, 4294901760
    %v1107 = vsub.f32 %v171, %v1106
    %1108 = vmatpush.msra.mxu0 %v1107
    %v1109 = vand.u32 %v170, 4294901760
    %v1110 = vsub.f32 %v170, %v1109
    %1111 = vmatpush.msra.mxu0 %v1110
    %v1112 = vand.u32 %v169, 4294901760
    %v1113 = vsub.f32 %v169, %v1112
    %1114 = vmatpush.msra.mxu0 %v1113
    %v1115 = vand.u32 %v168, 4294901760
    %v1116 = vsub.f32 %v168, %v1115
    %1117 = vmatpush.msra.mxu0 %v1116
    %v1118 = vand.u32 %v167, 4294901760
    %v1119 = vsub.f32 %v167, %v1118
    %1120 = vmatpush.msra.mxu0 %v1119
    %v1121 = vand.u32 %v166, 4294901760
    %v1122 = vsub.f32 %v166, %v1121
    %1123 = vmatpush.msra.mxu0 %v1122
    %v1124 = vand.u32 %v165, 4294901760
    %v1125 = vsub.f32 %v165, %v1124
    %1126 = vmatpush.msra.mxu0 %v1125
    %v1127 = vand.u32 %v164, 4294901760
    %v1128 = vsub.f32 %v164, %v1127
    %1129 = vmatpush.msra.mxu0 %v1128
    %v1130 = vand.u32 %v163, 4294901760
    %v1131 = vsub.f32 %v163, %v1130
    %1132 = vmatpush.msra.mxu0 %v1131
    %v1133 = vand.u32 %v162, 4294901760
    %v1134 = vsub.f32 %v162, %v1133
    %1135 = vmatpush.msra.mxu0 %v1134
    %v1136 = vand.u32 %v161, 4294901760
    %v1137 = vsub.f32 %v161, %v1136
    %1138 = vmatpush.msra.mxu0 %v1137
    %v1139 = vand.u32 %v160, 4294901760
    %v1140 = vsub.f32 %v160, %v1139
    %1141 = vmatpush.msra.mxu0 %v1140
    %v1142 = vand.u32 %v159, 4294901760
    %v1143 = vsub.f32 %v159, %v1142
    %1144 = vmatpush.msra.mxu0 %v1143
    %v1145 = vand.u32 %v158, 4294901760
    %v1146 = vsub.f32 %v158, %v1145
    %1147 = vmatpush.msra.mxu0 %v1146
    %v1148 = vand.u32 %v157, 4294901760
    %v1149 = vsub.f32 %v157, %v1148
    %1150 = vmatpush.msra.mxu0 %v1149
    %v1151 = vand.u32 %v156, 4294901760
    %v1152 = vsub.f32 %v156, %v1151
    %1153 = vmatpush.msra.mxu0 %v1152
    %v1154 = vand.u32 %v116, 4294901760
    %v1155 = vsub.f32 %v116, %v1154
    %1156 = vmatmul.f32.gmra.mxu0 %v1155
    %v1157 = vpop.f32.mrf.mxu0
    %v1158 = vadd.f32 %v1100, %v1157
    %v1159 = vand.u32 %v121, 4294901760
    %v1160 = vsub.f32 %v121, %v1159
    %1161 = vmatmul.f32.gmra.mxu0 %v1160
    %v1162 = vpop.f32.mrf.mxu0
    %v1163 = vadd.f32 %v1104, %v1162
    %1164 = vdwg.mxu0
    %v1165 = vand.u32 %v171, 4294901760
    %1166 = vmatpush.msra.mxu0 %v1165
    %v1167 = vand.u32 %v170, 4294901760
    %1168 = vmatpush.msra.mxu0 %v1167
    %v1169 = vand.u32 %v169, 4294901760
    %1170 = vmatpush.msra.mxu0 %v1169
    %v1171 = vand.u32 %v168, 4294901760
    %1172 = vmatpush.msra.mxu0 %v1171
    %v1173 = vand.u32 %v167, 4294901760
    %1174 = vmatpush.msra.mxu0 %v1173
    %v1175 = vand.u32 %v166, 4294901760
    %1176 = vmatpush.msra.mxu0 %v1175
    %v1177 = vand.u32 %v165, 4294901760
    %1178 = vmatpush.msra.mxu0 %v1177
    %v1179 = vand.u32 %v164, 4294901760
    %1180 = vmatpush.msra.mxu0 %v1179
    %v1181 = vand.u32 %v163, 4294901760
    %1182 = vmatpush.msra.mxu0 %v1181
    %v1183 = vand.u32 %v162, 4294901760
    %1184 = vmatpush.msra.mxu0 %v1183
    %v1185 = vand.u32 %v161, 4294901760
    %1186 = vmatpush.msra.mxu0 %v1185
    %v1187 = vand.u32 %v160, 4294901760
    %1188 = vmatpush.msra.mxu0 %v1187
    %v1189 = vand.u32 %v159, 4294901760
    %1190 = vmatpush.msra.mxu0 %v1189
    %v1191 = vand.u32 %v158, 4294901760
    %1192 = vmatpush.msra.mxu0 %v1191
    %v1193 = vand.u32 %v157, 4294901760
    %1194 = vmatpush.msra.mxu0 %v1193
    %v1195 = vand.u32 %v156, 4294901760
    %1196 = vmatpush.msra.mxu0 %v1195
    %v1197 = vand.u32 %v116, 4294901760
    %v1198 = vsub.f32 %v116, %v1197
    %v1199 = vand.u32 %v1198, 4294901760
    %1200 = vmatmul.f32.gmra.mxu0 %v1199
    %v1201 = vpop.f32.mrf.mxu0
    %v1202 = vadd.f32 %v1158, %v1201
    %v1203 = vand.u32 %v121, 4294901760
    %v1204 = vsub.f32 %v121, %v1203
    %v1205 = vand.u32 %v1204, 4294901760
    %1206 = vmatmul.f32.gmra.mxu0 %v1205
    %v1207 = vpop.f32.mrf.mxu0
    %v1208 = vadd.f32 %v1163, %v1207
    %1209 = vdwg.mxu0
    %v1210 = vand.u32 %v171, 4294901760
    %v1211 = vsub.f32 %v171, %v1210
    %v1212 = vand.u32 %v1211, 4294901760
    %1213 = vmatpush.msra.mxu0 %v1212
    %v1214 = vand.u32 %v170, 4294901760
    %v1215 = vsub.f32 %v170, %v1214
    %v1216 = vand.u32 %v1215, 4294901760
    %1217 = vmatpush.msra.mxu0 %v1216
    %v1218 = vand.u32 %v169, 4294901760
    %v1219 = vsub.f32 %v169, %v1218
    %v1220 = vand.u32 %v1219, 4294901760
    %1221 = vmatpush.msra.mxu0 %v1220
    %v1222 = vand.u32 %v168, 4294901760
    %v1223 = vsub.f32 %v168, %v1222
    %v1224 = vand.u32 %v1223, 4294901760
    %1225 = vmatpush.msra.mxu0 %v1224
    %v1226 = vand.u32 %v167, 4294901760
    %v1227 = vsub.f32 %v167, %v1226
    %v1228 = vand.u32 %v1227, 4294901760
    %1229 = vmatpush.msra.mxu0 %v1228
    %v1230 = vand.u32 %v166, 4294901760
    %v1231 = vsub.f32 %v166, %v1230
    %v1232 = vand.u32 %v1231, 4294901760
    %1233 = vmatpush.msra.mxu0 %v1232
    %v1234 = vand.u32 %v165, 4294901760
    %v1235 = vsub.f32 %v165, %v1234
    %v1236 = vand.u32 %v1235, 4294901760
    %1237 = vmatpush.msra.mxu0 %v1236
    %v1238 = vand.u32 %v164, 4294901760
    %v1239 = vsub.f32 %v164, %v1238
    %v1240 = vand.u32 %v1239, 4294901760
    %1241 = vmatpush.msra.mxu0 %v1240
    %v1242 = vand.u32 %v163, 4294901760
    %v1243 = vsub.f32 %v163, %v1242
    %v1244 = vand.u32 %v1243, 4294901760
    %1245 = vmatpush.msra.mxu0 %v1244
    %v1246 = vand.u32 %v162, 4294901760
    %v1247 = vsub.f32 %v162, %v1246
    %v1248 = vand.u32 %v1247, 4294901760
    %1249 = vmatpush.msra.mxu0 %v1248
    %v1250 = vand.u32 %v161, 4294901760
    %v1251 = vsub.f32 %v161, %v1250
    %v1252 = vand.u32 %v1251, 4294901760
    %1253 = vmatpush.msra.mxu0 %v1252
    %v1254 = vand.u32 %v160, 4294901760
    %v1255 = vsub.f32 %v160, %v1254
    %v1256 = vand.u32 %v1255, 4294901760
    %1257 = vmatpush.msra.mxu0 %v1256
    %v1258 = vand.u32 %v159, 4294901760
    %v1259 = vsub.f32 %v159, %v1258
    %v1260 = vand.u32 %v1259, 4294901760
    %1261 = vmatpush.msra.mxu0 %v1260
    %v1262 = vand.u32 %v158, 4294901760
    %v1263 = vsub.f32 %v158, %v1262
    %v1264 = vand.u32 %v1263, 4294901760
    %1265 = vmatpush.msra.mxu0 %v1264
    %v1266 = vand.u32 %v157, 4294901760
    %v1267 = vsub.f32 %v157, %v1266
    %v1268 = vand.u32 %v1267, 4294901760
    %1269 = vmatpush.msra.mxu0 %v1268
    %v1270 = vand.u32 %v156, 4294901760
    %v1271 = vsub.f32 %v156, %v1270
    %v1272 = vand.u32 %v1271, 4294901760
    %1273 = vmatpush.msra.mxu0 %v1272
    %v1274 = vand.u32 %v116, 4294901760
    %1275 = vmatmul.f32.gmra.mxu0 %v1274
    %v1276 = vpop.f32.mrf.mxu0
    %v1277 = vadd.f32 %v1202, %v1276
    %v1278 = vand.u32 %v121, 4294901760
    %1279 = vmatmul.f32.gmra.mxu0 %v1278
    %v1280 = vpop.f32.mrf.mxu0
    %v1281 = vadd.f32 %v1208, %v1280
    %1282 = vdwg.mxu0
    %v1283 = vand.u32 %v171, 4294901760
    %1284 = vmatpush.msra.mxu0 %v1283
    %v1285 = vand.u32 %v170, 4294901760
    %1286 = vmatpush.msra.mxu0 %v1285
    %v1287 = vand.u32 %v169, 4294901760
    %1288 = vmatpush.msra.mxu0 %v1287
    %v1289 = vand.u32 %v168, 4294901760
    %1290 = vmatpush.msra.mxu0 %v1289
    %v1291 = vand.u32 %v167, 4294901760
    %1292 = vmatpush.msra.mxu0 %v1291
    %v1293 = vand.u32 %v166, 4294901760
    %1294 = vmatpush.msra.mxu0 %v1293
    %v1295 = vand.u32 %v165, 4294901760
    %1296 = vmatpush.msra.mxu0 %v1295
    %v1297 = vand.u32 %v164, 4294901760
    %1298 = vmatpush.msra.mxu0 %v1297
    %v1299 = vand.u32 %v163, 4294901760
    %1300 = vmatpush.msra.mxu0 %v1299
    %v1301 = vand.u32 %v162, 4294901760
    %1302 = vmatpush.msra.mxu0 %v1301
    %v1303 = vand.u32 %v161, 4294901760
    %1304 = vmatpush.msra.mxu0 %v1303
    %v1305 = vand.u32 %v160, 4294901760
    %1306 = vmatpush.msra.mxu0 %v1305
    %v1307 = vand.u32 %v159, 4294901760
    %1308 = vmatpush.msra.mxu0 %v1307
    %v1309 = vand.u32 %v158, 4294901760
    %1310 = vmatpush.msra.mxu0 %v1309
    %v1311 = vand.u32 %v157, 4294901760
    %1312 = vmatpush.msra.mxu0 %v1311
    %v1313 = vand.u32 %v156, 4294901760
    %1314 = vmatpush.msra.mxu0 %v1313
    %v1315 = vand.u32 %v116, 4294901760
    %1316 = vmatmul.f32.gmra.mxu0 %v1315
    %v1317 = vpop.f32.mrf.mxu0
    %v1318 = vadd.f32 %v1277, %v1317
    %v1319 = vand.u32 %v121, 4294901760
    %1320 = vmatmul.f32.gmra.mxu0 %v1319
    %v1321 = vpop.f32.mrf.mxu0
    %v1322 = vadd.f32 %v1281, %v1321
    %1323 = vdwg.mxu0
    %v1324 = vand.u32 %v187, 4294901760
    %1325 = vmatpush.msra.mxu0 %v1324
    %v1326 = vand.u32 %v186, 4294901760
    %1327 = vmatpush.msra.mxu0 %v1326
    %v1328 = vand.u32 %v185, 4294901760
    %1329 = vmatpush.msra.mxu0 %v1328
    %v1330 = vand.u32 %v184, 4294901760
    %1331 = vmatpush.msra.mxu0 %v1330
    %v1332 = vand.u32 %v183, 4294901760
    %1333 = vmatpush.msra.mxu0 %v1332
    %v1334 = vand.u32 %v182, 4294901760
    %1335 = vmatpush.msra.mxu0 %v1334
    %v1336 = vand.u32 %v181, 4294901760
    %1337 = vmatpush.msra.mxu0 %v1336
    %v1338 = vand.u32 %v180, 4294901760
    %1339 = vmatpush.msra.mxu0 %v1338
    %v1340 = vand.u32 %v179, 4294901760
    %1341 = vmatpush.msra.mxu0 %v1340
    %v1342 = vand.u32 %v178, 4294901760
    %1343 = vmatpush.msra.mxu0 %v1342
    %v1344 = vand.u32 %v177, 4294901760
    %1345 = vmatpush.msra.mxu0 %v1344
    %v1346 = vand.u32 %v176, 4294901760
    %1347 = vmatpush.msra.mxu0 %v1346
    %v1348 = vand.u32 %v175, 4294901760
    %1349 = vmatpush.msra.mxu0 %v1348
    %v1350 = vand.u32 %v174, 4294901760
    %1351 = vmatpush.msra.mxu0 %v1350
    %v1352 = vand.u32 %v173, 4294901760
    %1353 = vmatpush.msra.mxu0 %v1352
    %v1354 = vand.u32 %v172, 4294901760
    %1355 = vmatpush.msra.mxu0 %v1354
    %v1356 = vand.u32 %v117, 4294901760
    %v1357 = vsub.f32 %v117, %v1356
    %v1358 = vand.u32 %v1357, 4294901760
    %v1359 = vsub.f32 %v1357, %v1358
    %v1360 = vand.u32 %v1359, 4294901760
    %1361 = vmatmul.f32.gmra.mxu0 %v1360
    %v1362 = vpop.f32.mrf.mxu0
    %v1363 = vadd.f32 %v1318, %v1362
    %v1364 = vand.u32 %v122, 4294901760
    %v1365 = vsub.f32 %v122, %v1364
    %v1366 = vand.u32 %v1365, 4294901760
    %v1367 = vsub.f32 %v1365, %v1366
    %v1368 = vand.u32 %v1367, 4294901760
    %1369 = vmatmul.f32.gmra.mxu0 %v1368
    %v1370 = vpop.f32.mrf.mxu0
    %v1371 = vadd.f32 %v1322, %v1370
    %1372 = vdwg.mxu0
    %v1373 = vand.u32 %v187, 4294901760
    %v1374 = vsub.f32 %v187, %v1373
    %v1375 = vand.u32 %v1374, 4294901760
    %v1376 = vsub.f32 %v1374, %v1375
    %v1377 = vand.u32 %v1376, 4294901760
    %1378 = vmatpush.msra.mxu0 %v1377
    %v1379 = vand.u32 %v186, 4294901760
    %v1380 = vsub.f32 %v186, %v1379
    %v1381 = vand.u32 %v1380, 4294901760
    %v1382 = vsub.f32 %v1380, %v1381
    %v1383 = vand.u32 %v1382, 4294901760
    %1384 = vmatpush.msra.mxu0 %v1383
    %v1385 = vand.u32 %v185, 4294901760
    %v1386 = vsub.f32 %v185, %v1385
    %v1387 = vand.u32 %v1386, 4294901760
    %v1388 = vsub.f32 %v1386, %v1387
    %v1389 = vand.u32 %v1388, 4294901760
    %1390 = vmatpush.msra.mxu0 %v1389
    %v1391 = vand.u32 %v184, 4294901760
    %v1392 = vsub.f32 %v184, %v1391
    %v1393 = vand.u32 %v1392, 4294901760
    %v1394 = vsub.f32 %v1392, %v1393
    %v1395 = vand.u32 %v1394, 4294901760
    %1396 = vmatpush.msra.mxu0 %v1395
    %v1397 = vand.u32 %v183, 4294901760
    %v1398 = vsub.f32 %v183, %v1397
    %v1399 = vand.u32 %v1398, 4294901760
    %v1400 = vsub.f32 %v1398, %v1399
    %v1401 = vand.u32 %v1400, 4294901760
    %1402 = vmatpush.msra.mxu0 %v1401
    %v1403 = vand.u32 %v182, 4294901760
    %v1404 = vsub.f32 %v182, %v1403
    %v1405 = vand.u32 %v1404, 4294901760
    %v1406 = vsub.f32 %v1404, %v1405
    %v1407 = vand.u32 %v1406, 4294901760
    %1408 = vmatpush.msra.mxu0 %v1407
    %v1409 = vand.u32 %v181, 4294901760
    %v1410 = vsub.f32 %v181, %v1409
    %v1411 = vand.u32 %v1410, 4294901760
    %v1412 = vsub.f32 %v1410, %v1411
    %v1413 = vand.u32 %v1412, 4294901760
    %1414 = vmatpush.msra.mxu0 %v1413
    %v1415 = vand.u32 %v180, 4294901760
    %v1416 = vsub.f32 %v180, %v1415
    %v1417 = vand.u32 %v1416, 4294901760
    %v1418 = vsub.f32 %v1416, %v1417
    %v1419 = vand.u32 %v1418, 4294901760
    %1420 = vmatpush.msra.mxu0 %v1419
    %v1421 = vand.u32 %v179, 4294901760
    %v1422 = vsub.f32 %v179, %v1421
    %v1423 = vand.u32 %v1422, 4294901760
    %v1424 = vsub.f32 %v1422, %v1423
    %v1425 = vand.u32 %v1424, 4294901760
    %1426 = vmatpush.msra.mxu0 %v1425
    %v1427 = vand.u32 %v178, 4294901760
    %v1428 = vsub.f32 %v178, %v1427
    %v1429 = vand.u32 %v1428, 4294901760
    %v1430 = vsub.f32 %v1428, %v1429
    %v1431 = vand.u32 %v1430, 4294901760
    %1432 = vmatpush.msra.mxu0 %v1431
    %v1433 = vand.u32 %v177, 4294901760
    %v1434 = vsub.f32 %v177, %v1433
    %v1435 = vand.u32 %v1434, 4294901760
    %v1436 = vsub.f32 %v1434, %v1435
    %v1437 = vand.u32 %v1436, 4294901760
    %1438 = vmatpush.msra.mxu0 %v1437
    %v1439 = vand.u32 %v176, 4294901760
    %v1440 = vsub.f32 %v176, %v1439
    %v1441 = vand.u32 %v1440, 4294901760
    %v1442 = vsub.f32 %v1440, %v1441
    %v1443 = vand.u32 %v1442, 4294901760
    %1444 = vmatpush.msra.mxu0 %v1443
    %v1445 = vand.u32 %v175, 4294901760
    %v1446 = vsub.f32 %v175, %v1445
    %v1447 = vand.u32 %v1446, 4294901760
    %v1448 = vsub.f32 %v1446, %v1447
    %v1449 = vand.u32 %v1448, 4294901760
    %1450 = vmatpush.msra.mxu0 %v1449
    %v1451 = vand.u32 %v174, 4294901760
    %v1452 = vsub.f32 %v174, %v1451
    %v1453 = vand.u32 %v1452, 4294901760
    %v1454 = vsub.f32 %v1452, %v1453
    %v1455 = vand.u32 %v1454, 4294901760
    %1456 = vmatpush.msra.mxu0 %v1455
    %v1457 = vand.u32 %v173, 4294901760
    %v1458 = vsub.f32 %v173, %v1457
    %v1459 = vand.u32 %v1458, 4294901760
    %v1460 = vsub.f32 %v1458, %v1459
    %v1461 = vand.u32 %v1460, 4294901760
    %1462 = vmatpush.msra.mxu0 %v1461
    %v1463 = vand.u32 %v172, 4294901760
    %v1464 = vsub.f32 %v172, %v1463
    %v1465 = vand.u32 %v1464, 4294901760
    %v1466 = vsub.f32 %v1464, %v1465
    %v1467 = vand.u32 %v1466, 4294901760
    %1468 = vmatpush.msra.mxu0 %v1467
    %v1469 = vand.u32 %v117, 4294901760
    %1470 = vmatmul.f32.gmra.mxu0 %v1469
    %v1471 = vpop.f32.mrf.mxu0
    %v1472 = vadd.f32 %v1363, %v1471
    %v1473 = vand.u32 %v122, 4294901760
    %1474 = vmatmul.f32.gmra.mxu0 %v1473
    %v1475 = vpop.f32.mrf.mxu0
    %v1476 = vadd.f32 %v1371, %v1475
    %1477 = vdwg.mxu0
    %v1478 = vand.u32 %v187, 4294901760
    %v1479 = vsub.f32 %v187, %v1478
    %1480 = vmatpush.msra.mxu0 %v1479
    %v1481 = vand.u32 %v186, 4294901760
    %v1482 = vsub.f32 %v186, %v1481
    %1483 = vmatpush.msra.mxu0 %v1482
    %v1484 = vand.u32 %v185, 4294901760
    %v1485 = vsub.f32 %v185, %v1484
    %1486 = vmatpush.msra.mxu0 %v1485
    %v1487 = vand.u32 %v184, 4294901760
    %v1488 = vsub.f32 %v184, %v1487
    %1489 = vmatpush.msra.mxu0 %v1488
    %v1490 = vand.u32 %v183, 4294901760
    %v1491 = vsub.f32 %v183, %v1490
    %1492 = vmatpush.msra.mxu0 %v1491
    %v1493 = vand.u32 %v182, 4294901760
    %v1494 = vsub.f32 %v182, %v1493
    %1495 = vmatpush.msra.mxu0 %v1494
    %v1496 = vand.u32 %v181, 4294901760
    %v1497 = vsub.f32 %v181, %v1496
    %1498 = vmatpush.msra.mxu0 %v1497
    %v1499 = vand.u32 %v180, 4294901760
    %v1500 = vsub.f32 %v180, %v1499
    %1501 = vmatpush.msra.mxu0 %v1500
    %v1502 = vand.u32 %v179, 4294901760
    %v1503 = vsub.f32 %v179, %v1502
    %1504 = vmatpush.msra.mxu0 %v1503
    %v1505 = vand.u32 %v178, 4294901760
    %v1506 = vsub.f32 %v178, %v1505
    %1507 = vmatpush.msra.mxu0 %v1506
    %v1508 = vand.u32 %v177, 4294901760
    %v1509 = vsub.f32 %v177, %v1508
    %1510 = vmatpush.msra.mxu0 %v1509
    %v1511 = vand.u32 %v176, 4294901760
    %v1512 = vsub.f32 %v176, %v1511
    %1513 = vmatpush.msra.mxu0 %v1512
    %v1514 = vand.u32 %v175, 4294901760
    %v1515 = vsub.f32 %v175, %v1514
    %1516 = vmatpush.msra.mxu0 %v1515
    %v1517 = vand.u32 %v174, 4294901760
    %v1518 = vsub.f32 %v174, %v1517
    %1519 = vmatpush.msra.mxu0 %v1518
    %v1520 = vand.u32 %v173, 4294901760
    %v1521 = vsub.f32 %v173, %v1520
    %1522 = vmatpush.msra.mxu0 %v1521
    %v1523 = vand.u32 %v172, 4294901760
    %v1524 = vsub.f32 %v172, %v1523
    %1525 = vmatpush.msra.mxu0 %v1524
    %v1526 = vand.u32 %v117, 4294901760
    %v1527 = vsub.f32 %v117, %v1526
    %1528 = vmatmul.f32.gmra.mxu0 %v1527
    %v1529 = vpop.f32.mrf.mxu0
    %v1530 = vadd.f32 %v1472, %v1529
    %v1531 = vand.u32 %v122, 4294901760
    %v1532 = vsub.f32 %v122, %v1531
    %1533 = vmatmul.f32.gmra.mxu0 %v1532
    %v1534 = vpop.f32.mrf.mxu0
    %v1535 = vadd.f32 %v1476, %v1534
    %1536 = vdwg.mxu0
    %v1537 = vand.u32 %v187, 4294901760
    %1538 = vmatpush.msra.mxu0 %v1537
    %v1539 = vand.u32 %v186, 4294901760
    %1540 = vmatpush.msra.mxu0 %v1539
    %v1541 = vand.u32 %v185, 4294901760
    %1542 = vmatpush.msra.mxu0 %v1541
    %v1543 = vand.u32 %v184, 4294901760
    %1544 = vmatpush.msra.mxu0 %v1543
    %v1545 = vand.u32 %v183, 4294901760
    %1546 = vmatpush.msra.mxu0 %v1545
    %v1547 = vand.u32 %v182, 4294901760
    %1548 = vmatpush.msra.mxu0 %v1547
    %v1549 = vand.u32 %v181, 4294901760
    %1550 = vmatpush.msra.mxu0 %v1549
    %v1551 = vand.u32 %v180, 4294901760
    %1552 = vmatpush.msra.mxu0 %v1551
    %v1553 = vand.u32 %v179, 4294901760
    %1554 = vmatpush.msra.mxu0 %v1553
    %v1555 = vand.u32 %v178, 4294901760
    %1556 = vmatpush.msra.mxu0 %v1555
    %v1557 = vand.u32 %v177, 4294901760
    %1558 = vmatpush.msra.mxu0 %v1557
    %v1559 = vand.u32 %v176, 4294901760
    %1560 = vmatpush.msra.mxu0 %v1559
    %v1561 = vand.u32 %v175, 4294901760
    %1562 = vmatpush.msra.mxu0 %v1561
    %v1563 = vand.u32 %v174, 4294901760
    %1564 = vmatpush.msra.mxu0 %v1563
    %v1565 = vand.u32 %v173, 4294901760
    %1566 = vmatpush.msra.mxu0 %v1565
    %v1567 = vand.u32 %v172, 4294901760
    %1568 = vmatpush.msra.mxu0 %v1567
    %v1569 = vand.u32 %v117, 4294901760
    %v1570 = vsub.f32 %v117, %v1569
    %v1571 = vand.u32 %v1570, 4294901760
    %1572 = vmatmul.f32.gmra.mxu0 %v1571
    %v1573 = vpop.f32.mrf.mxu0
    %v1574 = vadd.f32 %v1530, %v1573
    %v1575 = vand.u32 %v122, 4294901760
    %v1576 = vsub.f32 %v122, %v1575
    %v1577 = vand.u32 %v1576, 4294901760
    %1578 = vmatmul.f32.gmra.mxu0 %v1577
    %v1579 = vpop.f32.mrf.mxu0
    %v1580 = vadd.f32 %v1535, %v1579
    %1581 = vdwg.mxu0
    %v1582 = vand.u32 %v187, 4294901760
    %v1583 = vsub.f32 %v187, %v1582
    %v1584 = vand.u32 %v1583, 4294901760
    %1585 = vmatpush.msra.mxu0 %v1584
    %v1586 = vand.u32 %v186, 4294901760
    %v1587 = vsub.f32 %v186, %v1586
    %v1588 = vand.u32 %v1587, 4294901760
    %1589 = vmatpush.msra.mxu0 %v1588
    %v1590 = vand.u32 %v185, 4294901760
    %v1591 = vsub.f32 %v185, %v1590
    %v1592 = vand.u32 %v1591, 4294901760
    %1593 = vmatpush.msra.mxu0 %v1592
    %v1594 = vand.u32 %v184, 4294901760
    %v1595 = vsub.f32 %v184, %v1594
    %v1596 = vand.u32 %v1595, 4294901760
    %1597 = vmatpush.msra.mxu0 %v1596
    %v1598 = vand.u32 %v183, 4294901760
    %v1599 = vsub.f32 %v183, %v1598
    %v1600 = vand.u32 %v1599, 4294901760
    %1601 = vmatpush.msra.mxu0 %v1600
    %v1602 = vand.u32 %v182, 4294901760
    %v1603 = vsub.f32 %v182, %v1602
    %v1604 = vand.u32 %v1603, 4294901760
    %1605 = vmatpush.msra.mxu0 %v1604
    %v1606 = vand.u32 %v181, 4294901760
    %v1607 = vsub.f32 %v181, %v1606
    %v1608 = vand.u32 %v1607, 4294901760
    %1609 = vmatpush.msra.mxu0 %v1608
    %v1610 = vand.u32 %v180, 4294901760
    %v1611 = vsub.f32 %v180, %v1610
    %v1612 = vand.u32 %v1611, 4294901760
    %1613 = vmatpush.msra.mxu0 %v1612
    %v1614 = vand.u32 %v179, 4294901760
    %v1615 = vsub.f32 %v179, %v1614
    %v1616 = vand.u32 %v1615, 4294901760
    %1617 = vmatpush.msra.mxu0 %v1616
    %v1618 = vand.u32 %v178, 4294901760
    %v1619 = vsub.f32 %v178, %v1618
    %v1620 = vand.u32 %v1619, 4294901760
    %1621 = vmatpush.msra.mxu0 %v1620
    %v1622 = vand.u32 %v177, 4294901760
    %v1623 = vsub.f32 %v177, %v1622
    %v1624 = vand.u32 %v1623, 4294901760
    %1625 = vmatpush.msra.mxu0 %v1624
    %v1626 = vand.u32 %v176, 4294901760
    %v1627 = vsub.f32 %v176, %v1626
    %v1628 = vand.u32 %v1627, 4294901760
    %1629 = vmatpush.msra.mxu0 %v1628
    %v1630 = vand.u32 %v175, 4294901760
    %v1631 = vsub.f32 %v175, %v1630
    %v1632 = vand.u32 %v1631, 4294901760
    %1633 = vmatpush.msra.mxu0 %v1632
    %v1634 = vand.u32 %v174, 4294901760
    %v1635 = vsub.f32 %v174, %v1634
    %v1636 = vand.u32 %v1635, 4294901760
    %1637 = vmatpush.msra.mxu0 %v1636
    %v1638 = vand.u32 %v173, 4294901760
    %v1639 = vsub.f32 %v173, %v1638
    %v1640 = vand.u32 %v1639, 4294901760
    %1641 = vmatpush.msra.mxu0 %v1640
    %v1642 = vand.u32 %v172, 4294901760
    %v1643 = vsub.f32 %v172, %v1642
    %v1644 = vand.u32 %v1643, 4294901760
    %1645 = vmatpush.msra.mxu0 %v1644
    %v1646 = vand.u32 %v117, 4294901760
    %1647 = vmatmul.f32.gmra.mxu0 %v1646
    %v1648 = vpop.f32.mrf.mxu0
    %v1649 = vadd.f32 %v1574, %v1648
    %v1650 = vand.u32 %v122, 4294901760
    %1651 = vmatmul.f32.gmra.mxu0 %v1650
    %v1652 = vpop.f32.mrf.mxu0
    %v1653 = vadd.f32 %v1580, %v1652
    %1654 = vdwg.mxu0
    %v1655 = vand.u32 %v187, 4294901760
    %1656 = vmatpush.msra.mxu0 %v1655
    %v1657 = vand.u32 %v186, 4294901760
    %1658 = vmatpush.msra.mxu0 %v1657
    %v1659 = vand.u32 %v185, 4294901760
    %1660 = vmatpush.msra.mxu0 %v1659
    %v1661 = vand.u32 %v184, 4294901760
    %1662 = vmatpush.msra.mxu0 %v1661
    %v1663 = vand.u32 %v183, 4294901760
    %1664 = vmatpush.msra.mxu0 %v1663
    %v1665 = vand.u32 %v182, 4294901760
    %1666 = vmatpush.msra.mxu0 %v1665
    %v1667 = vand.u32 %v181, 4294901760
    %1668 = vmatpush.msra.mxu0 %v1667
    %v1669 = vand.u32 %v180, 4294901760
    %1670 = vmatpush.msra.mxu0 %v1669
    %v1671 = vand.u32 %v179, 4294901760
    %1672 = vmatpush.msra.mxu0 %v1671
    %v1673 = vand.u32 %v178, 4294901760
    %1674 = vmatpush.msra.mxu0 %v1673
    %v1675 = vand.u32 %v177, 4294901760
    %1676 = vmatpush.msra.mxu0 %v1675
    %v1677 = vand.u32 %v176, 4294901760
    %1678 = vmatpush.msra.mxu0 %v1677
    %v1679 = vand.u32 %v175, 4294901760
    %1680 = vmatpush.msra.mxu0 %v1679
    %v1681 = vand.u32 %v174, 4294901760
    %1682 = vmatpush.msra.mxu0 %v1681
    %v1683 = vand.u32 %v173, 4294901760
    %1684 = vmatpush.msra.mxu0 %v1683
    %v1685 = vand.u32 %v172, 4294901760
    %1686 = vmatpush.msra.mxu0 %v1685
    %v1687 = vand.u32 %v117, 4294901760
    %1688 = vmatmul.f32.gmra.mxu0 %v1687
    %v1689 = vpop.f32.mrf.mxu0
    %v1690 = vadd.f32 %v1649, %v1689
    %v1691 = vand.u32 %v122, 4294901760
    %1692 = vmatmul.f32.gmra.mxu0 %v1691
    %v1693 = vpop.f32.mrf.mxu0
    %v1694 = vadd.f32 %v1653, %v1693
    %1695 = vdwg.mxu0
    %1696 = vmatpush.msra.mxu0 0.0
    %1697 = vmatpush.msra.mxu0 0.0
    %1698 = vmatpush.msra.mxu0 0.0
    %1699 = vmatpush.msra.mxu0 0.0
    %1700 = vmatpush.msra.mxu0 0.0
    %1701 = vmatpush.msra.mxu0 0.0
    %1702 = vmatpush.msra.mxu0 0.0
    %v1703 = vand.u32 %v206, 4294901760
    %1704 = vmatpush.msra.mxu0 %v1703
    %v1705 = vand.u32 %v195, 4294901760
    %1706 = vmatpush.msra.mxu0 %v1705
    %v1707 = vand.u32 %v194, 4294901760
    %1708 = vmatpush.msra.mxu0 %v1707
    %v1709 = vand.u32 %v193, 4294901760
    %1710 = vmatpush.msra.mxu0 %v1709
    %v1711 = vand.u32 %v192, 4294901760
    %1712 = vmatpush.msra.mxu0 %v1711
    %v1713 = vand.u32 %v191, 4294901760
    %1714 = vmatpush.msra.mxu0 %v1713
    %v1715 = vand.u32 %v190, 4294901760
    %1716 = vmatpush.msra.mxu0 %v1715
    %v1717 = vand.u32 %v189, 4294901760
    %1718 = vmatpush.msra.mxu0 %v1717
    %v1719 = vand.u32 %v188, 4294901760
    %1720 = vmatpush.msra.mxu0 %v1719
    %v1721 = vand.u32 %v199, 4294901760
    %v1722 = vsub.f32 %v199, %v1721
    %v1723 = vand.u32 %v1722, 4294901760
    %v1724 = vsub.f32 %v1722, %v1723
    %v1725 = vand.u32 %v1724, 4294901760
    %1726 = vmatmul.f32.gmra.mxu0 %v1725
    %v1727 = vpop.f32.mrf.mxu0
    %v1728 = vadd.f32 %v1690, %v1727
    %v1729 = vand.u32 %v202, 4294901760
    %v1730 = vsub.f32 %v202, %v1729
    %v1731 = vand.u32 %v1730, 4294901760
    %v1732 = vsub.f32 %v1730, %v1731
    %v1733 = vand.u32 %v1732, 4294901760
    %1734 = vmatmul.f32.gmra.mxu0 %v1733
    %v1735 = vpop.f32.mrf.mxu0
    %v1736 = vadd.f32 %v1694, %v1735
    %1737 = vdwg.mxu0
    %1738 = vmatpush.msra.mxu0 0.0
    %1739 = vmatpush.msra.mxu0 0.0
    %1740 = vmatpush.msra.mxu0 0.0
    %1741 = vmatpush.msra.mxu0 0.0
    %1742 = vmatpush.msra.mxu0 0.0
    %1743 = vmatpush.msra.mxu0 0.0
    %1744 = vmatpush.msra.mxu0 0.0
    %v1745 = vand.u32 %v206, 4294901760
    %v1746 = vsub.f32 %v206, %v1745
    %v1747 = vand.u32 %v1746, 4294901760
    %v1748 = vsub.f32 %v1746, %v1747
    %v1749 = vand.u32 %v1748, 4294901760
    %1750 = vmatpush.msra.mxu0 %v1749
    %v1751 = vand.u32 %v195, 4294901760
    %v1752 = vsub.f32 %v195, %v1751
    %v1753 = vand.u32 %v1752, 4294901760
    %v1754 = vsub.f32 %v1752, %v1753
    %v1755 = vand.u32 %v1754, 4294901760
    %1756 = vmatpush.msra.mxu0 %v1755
    %v1757 = vand.u32 %v194, 4294901760
    %v1758 = vsub.f32 %v194, %v1757
    %v1759 = vand.u32 %v1758, 4294901760
    %v1760 = vsub.f32 %v1758, %v1759
    %v1761 = vand.u32 %v1760, 4294901760
    %1762 = vmatpush.msra.mxu0 %v1761
    %v1763 = vand.u32 %v193, 4294901760
    %v1764 = vsub.f32 %v193, %v1763
    %v1765 = vand.u32 %v1764, 4294901760
    %v1766 = vsub.f32 %v1764, %v1765
    %v1767 = vand.u32 %v1766, 4294901760
    %1768 = vmatpush.msra.mxu0 %v1767
    %v1769 = vand.u32 %v192, 4294901760
    %v1770 = vsub.f32 %v192, %v1769
    %v1771 = vand.u32 %v1770, 4294901760
    %v1772 = vsub.f32 %v1770, %v1771
    %v1773 = vand.u32 %v1772, 4294901760
    %1774 = vmatpush.msra.mxu0 %v1773
    %v1775 = vand.u32 %v191, 4294901760
    %v1776 = vsub.f32 %v191, %v1775
    %v1777 = vand.u32 %v1776, 4294901760
    %v1778 = vsub.f32 %v1776, %v1777
    %v1779 = vand.u32 %v1778, 4294901760
    %1780 = vmatpush.msra.mxu0 %v1779
    %v1781 = vand.u32 %v190, 4294901760
    %v1782 = vsub.f32 %v190, %v1781
    %v1783 = vand.u32 %v1782, 4294901760
    %v1784 = vsub.f32 %v1782, %v1783
    %v1785 = vand.u32 %v1784, 4294901760
    %1786 = vmatpush.msra.mxu0 %v1785
    %v1787 = vand.u32 %v189, 4294901760
    %v1788 = vsub.f32 %v189, %v1787
    %v1789 = vand.u32 %v1788, 4294901760
    %v1790 = vsub.f32 %v1788, %v1789
    %v1791 = vand.u32 %v1790, 4294901760
    %1792 = vmatpush.msra.mxu0 %v1791
    %v1793 = vand.u32 %v188, 4294901760
    %v1794 = vsub.f32 %v188, %v1793
    %v1795 = vand.u32 %v1794, 4294901760
    %v1796 = vsub.f32 %v1794, %v1795
    %v1797 = vand.u32 %v1796, 4294901760
    %1798 = vmatpush.msra.mxu0 %v1797
    %v1799 = vand.u32 %v199, 4294901760
    %1800 = vmatmul.f32.gmra.mxu0 %v1799
    %v1801 = vpop.f32.mrf.mxu0
    %v1802 = vadd.f32 %v1728, %v1801
    %v1803 = vand.u32 %v202, 4294901760
    %1804 = vmatmul.f32.gmra.mxu0 %v1803
    %v1805 = vpop.f32.mrf.mxu0
    %v1806 = vadd.f32 %v1736, %v1805
    %1807 = vdwg.mxu0
    %1808 = vmatpush.msra.mxu0 0.0
    %1809 = vmatpush.msra.mxu0 0.0
    %1810 = vmatpush.msra.mxu0 0.0
    %1811 = vmatpush.msra.mxu0 0.0
    %1812 = vmatpush.msra.mxu0 0.0
    %1813 = vmatpush.msra.mxu0 0.0
    %1814 = vmatpush.msra.mxu0 0.0
    %v1815 = vand.u32 %v206, 4294901760
    %v1816 = vsub.f32 %v206, %v1815
    %1817 = vmatpush.msra.mxu0 %v1816
    %v1818 = vand.u32 %v195, 4294901760
    %v1819 = vsub.f32 %v195, %v1818
    %1820 = vmatpush.msra.mxu0 %v1819
    %v1821 = vand.u32 %v194, 4294901760
    %v1822 = vsub.f32 %v194, %v1821
    %1823 = vmatpush.msra.mxu0 %v1822
    %v1824 = vand.u32 %v193, 4294901760
    %v1825 = vsub.f32 %v193, %v1824
    %1826 = vmatpush.msra.mxu0 %v1825
    %v1827 = vand.u32 %v192, 4294901760
    %v1828 = vsub.f32 %v192, %v1827
    %1829 = vmatpush.msra.mxu0 %v1828
    %v1830 = vand.u32 %v191, 4294901760
    %v1831 = vsub.f32 %v191, %v1830
    %1832 = vmatpush.msra.mxu0 %v1831
    %v1833 = vand.u32 %v190, 4294901760
    %v1834 = vsub.f32 %v190, %v1833
    %1835 = vmatpush.msra.mxu0 %v1834
    %v1836 = vand.u32 %v189, 4294901760
    %v1837 = vsub.f32 %v189, %v1836
    %1838 = vmatpush.msra.mxu0 %v1837
    %v1839 = vand.u32 %v188, 4294901760
    %v1840 = vsub.f32 %v188, %v1839
    %1841 = vmatpush.msra.mxu0 %v1840
    %v1842 = vand.u32 %v199, 4294901760
    %v1843 = vsub.f32 %v199, %v1842
    %1844 = vmatmul.f32.gmra.mxu0 %v1843
    %v1845 = vpop.f32.mrf.mxu0
    %v1846 = vadd.f32 %v1802, %v1845
    %v1847 = vand.u32 %v202, 4294901760
    %v1848 = vsub.f32 %v202, %v1847
    %1849 = vmatmul.f32.gmra.mxu0 %v1848
    %v1850 = vpop.f32.mrf.mxu0
    %v1851 = vadd.f32 %v1806, %v1850
    %1852 = vdwg.mxu0
    %1853 = vmatpush.msra.mxu0 0.0
    %1854 = vmatpush.msra.mxu0 0.0
    %1855 = vmatpush.msra.mxu0 0.0
    %1856 = vmatpush.msra.mxu0 0.0
    %1857 = vmatpush.msra.mxu0 0.0
    %1858 = vmatpush.msra.mxu0 0.0
    %1859 = vmatpush.msra.mxu0 0.0
    %v1860 = vand.u32 %v206, 4294901760
    %1861 = vmatpush.msra.mxu0 %v1860
    %v1862 = vand.u32 %v195, 4294901760
    %1863 = vmatpush.msra.mxu0 %v1862
    %v1864 = vand.u32 %v194, 4294901760
    %1865 = vmatpush.msra.mxu0 %v1864
    %v1866 = vand.u32 %v193, 4294901760
    %1867 = vmatpush.msra.mxu0 %v1866
    %v1868 = vand.u32 %v192, 4294901760
    %1869 = vmatpush.msra.mxu0 %v1868
    %v1870 = vand.u32 %v191, 4294901760
    %1871 = vmatpush.msra.mxu0 %v1870
    %v1872 = vand.u32 %v190, 4294901760
    %1873 = vmatpush.msra.mxu0 %v1872
    %v1874 = vand.u32 %v189, 4294901760
    %1875 = vmatpush.msra.mxu0 %v1874
    %v1876 = vand.u32 %v188, 4294901760
    %1877 = vmatpush.msra.mxu0 %v1876
    %v1878 = vand.u32 %v199, 4294901760
    %v1879 = vsub.f32 %v199, %v1878
    %v1880 = vand.u32 %v1879, 4294901760
    %1881 = vmatmul.f32.gmra.mxu0 %v1880
    %v1882 = vpop.f32.mrf.mxu0
    %v1883 = vadd.f32 %v1846, %v1882
    %v1884 = vand.u32 %v202, 4294901760
    %v1885 = vsub.f32 %v202, %v1884
    %v1886 = vand.u32 %v1885, 4294901760
    %1887 = vmatmul.f32.gmra.mxu0 %v1886
    %v1888 = vpop.f32.mrf.mxu0
    %v1889 = vadd.f32 %v1851, %v1888
    %1890 = vdwg.mxu0
    %1891 = vmatpush.msra.mxu0 0.0
    %1892 = vmatpush.msra.mxu0 0.0
    %1893 = vmatpush.msra.mxu0 0.0
    %1894 = vmatpush.msra.mxu0 0.0
    %1895 = vmatpush.msra.mxu0 0.0
    %1896 = vmatpush.msra.mxu0 0.0
    %1897 = vmatpush.msra.mxu0 0.0
    %v1898 = vand.u32 %v206, 4294901760
    %v1899 = vsub.f32 %v206, %v1898
    %v1900 = vand.u32 %v1899, 4294901760
    %1901 = vmatpush.msra.mxu0 %v1900
    %v1902 = vand.u32 %v195, 4294901760
    %v1903 = vsub.f32 %v195, %v1902
    %v1904 = vand.u32 %v1903, 4294901760
    %1905 = vmatpush.msra.mxu0 %v1904
    %v1906 = vand.u32 %v194, 4294901760
    %v1907 = vsub.f32 %v194, %v1906
    %v1908 = vand.u32 %v1907, 4294901760
    %1909 = vmatpush.msra.mxu0 %v1908
    %v1910 = vand.u32 %v193, 4294901760
    %v1911 = vsub.f32 %v193, %v1910
    %v1912 = vand.u32 %v1911, 4294901760
    %1913 = vmatpush.msra.mxu0 %v1912
    %v1914 = vand.u32 %v192, 4294901760
    %v1915 = vsub.f32 %v192, %v1914
    %v1916 = vand.u32 %v1915, 4294901760
    %1917 = vmatpush.msra.mxu0 %v1916
    %v1918 = vand.u32 %v191, 4294901760
    %v1919 = vsub.f32 %v191, %v1918
    %v1920 = vand.u32 %v1919, 4294901760
    %1921 = vmatpush.msra.mxu0 %v1920
    %v1922 = vand.u32 %v190, 4294901760
    %v1923 = vsub.f32 %v190, %v1922
    %v1924 = vand.u32 %v1923, 4294901760
    %1925 = vmatpush.msra.mxu0 %v1924
    %v1926 = vand.u32 %v189, 4294901760
    %v1927 = vsub.f32 %v189, %v1926
    %v1928 = vand.u32 %v1927, 4294901760
    %1929 = vmatpush.msra.mxu0 %v1928
    %v1930 = vand.u32 %v188, 4294901760
    %v1931 = vsub.f32 %v188, %v1930
    %v1932 = vand.u32 %v1931, 4294901760
    %1933 = vmatpush.msra.mxu0 %v1932
    %v1934 = vand.u32 %v199, 4294901760
    %1935 = vmatmul.f32.gmra.mxu0 %v1934
    %v1936 = vpop.f32.mrf.mxu0
    %v1937 = vadd.f32 %v1883, %v1936
    %v1938 = vand.u32 %v202, 4294901760
    %1939 = vmatmul.f32.gmra.mxu0 %v1938
    %v1940 = vpop.f32.mrf.mxu0
    %v1941 = vadd.f32 %v1889, %v1940
    %1942 = vdwg.mxu0
    %1943 = vmatpush.msra.mxu0 0.0
    %1944 = vmatpush.msra.mxu0 0.0
    %1945 = vmatpush.msra.mxu0 0.0
    %1946 = vmatpush.msra.mxu0 0.0
    %1947 = vmatpush.msra.mxu0 0.0
    %1948 = vmatpush.msra.mxu0 0.0
    %1949 = vmatpush.msra.mxu0 0.0
    %v1950 = vand.u32 %v206, 4294901760
    %1951 = vmatpush.msra.mxu0 %v1950
    %v1952 = vand.u32 %v195, 4294901760
    %1953 = vmatpush.msra.mxu0 %v1952
    %v1954 = vand.u32 %v194, 4294901760
    %1955 = vmatpush.msra.mxu0 %v1954
    %v1956 = vand.u32 %v193, 4294901760
    %1957 = vmatpush.msra.mxu0 %v1956
    %v1958 = vand.u32 %v192, 4294901760
    %1959 = vmatpush.msra.mxu0 %v1958
    %v1960 = vand.u32 %v191, 4294901760
    %1961 = vmatpush.msra.mxu0 %v1960
    %v1962 = vand.u32 %v190, 4294901760
    %1963 = vmatpush.msra.mxu0 %v1962
    %v1964 = vand.u32 %v189, 4294901760
    %1965 = vmatpush.msra.mxu0 %v1964
    %v1966 = vand.u32 %v188, 4294901760
    %1967 = vmatpush.msra.mxu0 %v1966
    %v1968 = vand.u32 %v199, 4294901760
    %1969 = vmatmul.f32.gmra.mxu0 %v1968
    %v1970 = vpop.f32.mrf.mxu0
    %v1971 = vadd.f32 %v1937, %v1970
    %v1972 = vand.u32 %v202, 4294901760
    %1973 = vmatmul.f32.gmra.mxu0 %v1972
    %v1974 = vpop.f32.mrf.mxu0
    %v1975 = vadd.f32 %v1941, %v1974
    %1976 = vdwg.mxu0
    %vm1977 = vcmask 261120
    %v1978 = vsel %vm1977, %v1971, 0.0
    %1979 = vadd.xlane.f32.xlu0 %v1978
    %v1980 = vpop.xlane.xlu0 %1979
    %v1981 = vsel %vm1977, %v1975, 0.0
    %1982 = vadd.xlane.f32.xlu0 %v1981
    %v1983 = vpop.xlane.xlu0 %1982
    %v1984 = vrcp.pop 32.0
    %v1985 = vmul.f32 32.0, %v1984
    %v1986 = vsub.f32 1.0, %v1985
    %v1987 = vmul.f32 %v1984, %v1986
    %v1988 = vadd.f32 %v1984, %v1987
    %vm1989 = vweird.f32 %v1984
    %v1990 = vsel %vm1989, %v1984, %v1988
    %v1991 = vmul.f32 %v1980, %v1990
    %v1992 = vmul.f32 %v1983, %v1990
    %v1993 = vsub.f32 %v1971, %v1991
    %v1994 = vsub.f32 %v1975, %v1992
    %v1995 = vmul.f32 %v1993, %v1993
    %v1996 = vmul.f32 %v1994, %v1994
    %v1997 = vsel %vm1977, %v1995, 0.0
    %1998 = vadd.xlane.f32.xlu0 %v1997
    %v1999 = vpop.xlane.xlu0 %1998
    %v2000 = vsel %vm1977, %v1996, 0.0
    %2001 = vadd.xlane.f32.xlu0 %v2000
    %v2002 = vpop.xlane.xlu0 %2001
    %v2003 = vmul.f32 %v1999, %v1990
    %v2004 = vmul.f32 %v2002, %v1990
    %v2005 = vadd.f32 %v2003, 1e-12
    %v2006 = vadd.f32 %v2004, 1e-12
    %v2007 = vrsqrt.pop %v2005
    %v2008 = vmul.f32 %v2007, %v2005
    %v2009 = vmul.f32 %v2008, %v2007
    %v2010 = vmul.f32 0.5, %v2009
    %v2011 = vsub.f32 1.5, %v2010
    %v2012 = vmul.f32 %v2007, %v2011
    %vm2013 = vweird.f32 %v2005
    %vm2014 = vweird.f32 %v2007
    %vm2015 = vmor %vm2013, %vm2014
    %v2016 = vsel %vm2015, %v2007, %v2012
    %v2017 = vrsqrt.pop %v2006
    %v2018 = vmul.f32 %v2017, %v2006
    %v2019 = vmul.f32 %v2018, %v2017
    %v2020 = vmul.f32 0.5, %v2019
    %v2021 = vsub.f32 1.5, %v2020
    %v2022 = vmul.f32 %v2017, %v2021
    %vm2023 = vweird.f32 %v2006
    %vm2024 = vweird.f32 %v2017
    %vm2025 = vmor %vm2023, %vm2024
    %v2026 = vsel %vm2025, %v2017, %v2022
    %v2027 = vmul.f32 %v1993, %v2016
    %v2028 = vmul.f32 %v1994, %v2026
    %v2029 = vld [vmem:[%s4] sm:$0x1]
    %v2031 = vperm.slane %v2029, 0
    %v2033 = vmul.f32 %v2031, %v2027
    %v2034 = vmul.f32 %v2031, %v2028
    %v2035 = vld [vmem:[%s5] sm:$0x1]
    %v2037 = vperm.slane %v2035, 0
    %v2039 = vadd.f32 %v2033, %v2037
    %v2040 = vadd.f32 %v2034, %v2037
    %2041 = vst.msk [vmem:[#allocation2] sm:$0xff] %vm1977, %v2039
    %2042 = vst.msk [vmem:[#allocation2 + $0x8] sm:$0xff] %vm1977, %v2040
    // Predicated region
    $region26: #{tpu_custom_call.1} parent=1 // pred_check
      _
    $region27: #{tpu_custom_call.1} parent=1 // pred_check_branch
      %2044 = sbr.rel (0) target = $region29
    $region28: #{tpu_custom_call.1} parent=1 // pred_region
      %2046 = vsyncadd [#allocation3], 0
      %s2047 = sshll.u32 [#allocation2], 4
      %s2048 = int_to_ptr.vmem [resolvable:$true] %s2047
      %s2049 = sshll.u32 %s6, 4
      %s2050 = int_to_ptr.hbm [resolvable:$true] %s2049
      %2055 = dma.vmem_to_hbm [thread:$0]  %s2048, 256, %s2050, [#allocation3], 128, 128, 8
    $region29: #{tpu_custom_call.1} parent=1 // pred_fallthru
      _
    // Predicated region
    $region30: #{tpu_custom_call.1} parent=1 // pred_check
      _
    $region31: #{tpu_custom_call.1} parent=1 // pred_check_branch
      %2057 = sbr.rel (0) target = $region33
    $region32: #{tpu_custom_call.1} parent=1 // pred_region
      %2059 = dma.done [#allocation3], 256
    $region33: #{tpu_custom_call.1} parent=1 // pred_fallthru
      _
    %2060 = vsyncpa [#allocation3], 1

</llo_original>
